<compile_context>
chip_gen: v7x
topology: tpu7x:2x2x1
jax: 0.10.0
libtpu: 0.0.40
codegen_flags: <defaults>
</compile_context>

<pallas_src>
import functools
import math

import jax
import jax.numpy as jnp
from jax.experimental import pallas as pl
from jax.experimental.pallas import tpu as pltpu

# Plain Python floats (NOT jnp scalars) so the kernel does not capture traced
# constants — that was the previous compile failure.
_NEG_FILL = -1.0e30
_POS_FILL = 1.0e30
_VALID_LO = -5.0e29
_VALID_HI = 5.0e29


def _triplet_loss_kernel(n_valid,
                         xr_ref, xct_ref, t_col_ref, c_col_ref,
                         t_row_ref, c_row_ref, sq_col_ref, hsq_row_ref,
                         sp_ref, valid_ref,
                         ap_ref, an_ref):
    """Grid = (row tiles ["parallel"], column tiles ["arbitrary"]).

    Per (i, j) step we update, per row, the running max/min of
        h = 0.5 * ||x_j||^2 - <x_i, x_j>
    over the masked columns.  Since d2 = 2*h + ||x_i||^2 is monotone in h for a
    fixed row, the hard positive / hard negative choice is identical while the
    per-element work is a single broadcast subtract.  sqrt / clamp / softplus
    run once per row at the last column tile.
    """
    j = pl.program_id(1)
    tn = xct_ref.shape[1]

    @pl.when(j == 0)
    def _():
        ap_ref[...] = jnp.full(ap_ref.shape, _NEG_FILL, dtype=jnp.float32)
        an_ref[...] = jnp.full(an_ref.shape, _POS_FILL, dtype=jnp.float32)

    # MXU: natural (tm, d) @ (d, tn); the column operand was pre-transposed in
    # the wrapper, so no in-kernel transpose.  Operands stay in native dtype,
    # accumulation in f32.
    gram = jnp.dot(xr_ref[...], xct_ref[...],
                   preferred_element_type=jnp.float32)            # (tm, tn)

    # Resident metadata, sliced on the sublane axis by the column-tile index.
    half_sq_c = hsq_row_ref[pl.ds(j, 1), :]                       # (1, tn) f32
    t_row = t_row_ref[pl.ds(j, 1), :]                             # (1, tn) i32
    c_row = c_row_ref[pl.ds(j, 1), :]                             # (1, tn) i32
    t_col = t_col_ref[...]                                        # (tm, 1) i32
    c_col = c_col_ref[...]                                        # (tm, 1) i32

    h = half_sq_c - gram                                          # (tm, tn)

    col_ids = jax.lax.broadcasted_iota(jnp.int32, (1, tn), 1) + j * tn
    real_col = col_ids < n_valid                                  # drop padded cols
    same_id = t_col == t_row
    diff_cam = jnp.logical_and(c_col != c_row, real_col)          # mask_cp
    pos_mask = jnp.logical_and(same_id, diff_cam)                 # mask_cp_id2
    neg_mask = jnp.logical_and(jnp.logical_not(same_id), diff_cam)  # mask_cp_id

    ap_ref[...] = jnp.maximum(
        ap_ref[...],
        jnp.max(jnp.where(pos_mask, h, _NEG_FILL), axis=1, keepdims=True))
    an_ref[...] = jnp.minimum(
        an_ref[...],
        jnp.min(jnp.where(neg_mask, h, _POS_FILL), axis=1, keepdims=True))

    @pl.when(j == pl.num_programs(1) - 1)
    def _():
        hp = ap_ref[...]
        hn = an_ref[...]
        # Rows whose cross-camera positive / negative mining came up empty are
        # dropped (the PyTorch try/except skips them).  Test the fill sentinels
        # BEFORE re-adding sq_r / rescaling so the thresholds keep their meaning.
        valid = jnp.logical_and(hp > _VALID_LO, hn < _VALID_HI)
        sq_r = sq_col_ref[...]                                    # (tm, 1) f32
        d2_ap = jnp.maximum(2.0 * hp + sq_r, 1e-12)               # clamp(min=1e-12)
        d2_an = jnp.maximum(2.0 * hn + sq_r, 1e-12)
        dist_ap = jnp.sqrt(d2_ap)
        dist_an = jnp.sqrt(d2_an)
        # SoftMarginLoss with y = 1: log(1 + exp(-(dist_an - dist_ap))), stable.
        z = dist_ap - dist_an
        softplus = jnp.maximum(z, 0.0) + jnp.log1p(jnp.exp(-jnp.abs(z)))
        sp_ref[...] = jnp.where(valid, softplus, 0.0)
        valid_ref[...] = valid.astype(jnp.float32)


def _round_up(x, m):
    return (x + m - 1) // m * m


def _pick_tile(limit, cap):
    """Largest power-of-two multiple of 128 that is <= min(limit, cap)."""
    t = 128
    while t * 2 <= min(limit, cap):
        t *= 2
    return t


def _vmem_budget(tm, tn, d_pad, n_pad, itemsize):
    b = 2 * tm * d_pad * itemsize          # row features (double buffered)
    b += 2 * d_pad * tn * itemsize         # column features (double buffered)
    b += 2 * 3 * n_pad * 4                 # resident label / cam / half-norm rows
    b += 2 * 3 * tm * 4                    # per-row-tile labels / cams / norms
    b += 2 * 2 * tm * 4                    # outputs
    b += 2 * tm * 4                        # scratch accumulators
    b += 6 * tm * tn * 4                   # (tm, tn) f32 temporaries
    return b


@functools.partial(jax.jit, static_argnames=("tm", "tn"))
def triplet_loss(inputs, targets, cps, *, tm=None, tn=None):
    """inputs: (N, D) float features; targets, cps: (N,) int ids / camera ids.

    Mirrors TripletLoss.forward(inputs, (targets, cps)); margin is unused by the
    original forward (SoftMarginLoss), so it is unused here too.
    """
    n, d = inputs.shape
    n128 = _round_up(n, 128)
    d_pad = _round_up(d, 128)
    itemsize = jnp.dtype(inputs.dtype).itemsize

    try:
        vmem_cap = int(pltpu.get_tpu_info().vmem_capacity_bytes)
    except Exception:
        vmem_cap = 64 << 20                # assume the smallest (v7x) if unknown
    vmem_cap = (vmem_cap * 3) // 4         # leave headroom for the compiler

    if tn is None:
        tn = _pick_tile(n128, 256)         # match the 256-wide MXU on v6e/v7x
    if tm is None:
        tm = _pick_tile(n128, 512)         # bigger row tile -> fewer column streams
        # v7x megacore: keep >= 2 row tiles when the batch allows it.
        while (tm > 128 and n128 > tn
               and _round_up(n, math.lcm(tm, tn)) // tm < 2):
            tm //= 2
    # Shrink tiles instead of exceeding (or lying about) physical VMEM.
    while (_vmem_budget(tm, tn, d_pad, _round_up(n, math.lcm(tm, tn)), itemsize)
           > vmem_cap and tm > 128):
        tm //= 2
    while (_vmem_budget(tm, tn, d_pad, _round_up(n, math.lcm(tm, tn)), itemsize)
           > vmem_cap and tn > 128):
        tn //= 2

    n_pad = _round_up(n, math.lcm(tm, tn))
    grid = (n_pad // tm, n_pad // tn)
    nbj = n_pad // tn

    x = inputs
    if (n_pad, d_pad) != (n, d):
        x = jnp.pad(x, ((0, n_pad - n), (0, d_pad - d)))
    x_t = x.T                                              # (d_pad, n_pad) column operand
    t = jnp.pad(targets.astype(jnp.int32), (0, n_pad - n))
    c = jnp.pad(cps.astype(jnp.int32), (0, n_pad - n))
    t_col = t.reshape(n_pad, 1)
    c_col = c.reshape(n_pad, 1)
    t_rows = t.reshape(nbj, tn)                            # resident, sliced by j
    c_rows = c.reshape(nbj, tn)
    # Squared row norms once, in f32 (the kernel never casts feature tiles).
    sq = jnp.sum(x.astype(jnp.float32) ** 2, axis=1)
    sq_col = sq.reshape(n_pad, 1)
    hsq_rows = (0.5 * sq).reshape(nbj, tn)

    budget = _vmem_budget(tm, tn, d_pad, n_pad, itemsize)
    vmem_limit = int(min(max(int(1.5 * budget), 32 << 20), vmem_cap))

    sp, valid = pl.pallas_call(
        functools.partial(_triplet_loss_kernel, n),
        out_shape=(
            jax.ShapeDtypeStruct((n_pad, 1), jnp.float32),
            jax.ShapeDtypeStruct((n_pad, 1), jnp.float32),
        ),
        grid_spec=pltpu.PrefetchScalarGridSpec(
            num_scalar_prefetch=0,
            grid=grid,
            in_specs=[
                pl.BlockSpec((tm, d_pad), lambda i, j: (i, 0)),    # row features
                pl.BlockSpec((d_pad, tn), lambda i, j: (0, j)),    # col features (pre-T)
                pl.BlockSpec((tm, 1), lambda i, j: (i, 0)),        # row ids
                pl.BlockSpec((tm, 1), lambda i, j: (i, 0)),        # row cams
                pl.BlockSpec((nbj, tn), lambda i, j: (0, 0)),      # all ids (resident)
                pl.BlockSpec((nbj, tn), lambda i, j: (0, 0)),      # all cams (resident)
                pl.BlockSpec((tm, 1), lambda i, j: (i, 0)),        # ||x_i||^2
                pl.BlockSpec((nbj, tn), lambda i, j: (0, 0)),      # 0.5*||x_j||^2 (resident)
            ],
            out_specs=[
                pl.BlockSpec((tm, 1), lambda i, j: (i, 0)),        # softplus per row
                pl.BlockSpec((tm, 1), lambda i, j: (i, 0)),        # valid per row
            ],
            scratch_shapes=[
                pltpu.VMEM((tm, 1), jnp.float32),                  # running max h (pos)
                pltpu.VMEM((tm, 1), jnp.float32),                  # running min h (neg)
            ],
        ),
        compiler_params=pltpu.CompilerParams(
            dimension_semantics=("parallel", "arbitrary"),
            vmem_limit_bytes=vmem_limit,
        ),
        cost_estimate=pl.CostEstimate(
            flops=2 * n_pad * n_pad * d_pad,
            transcendentals=4 * n_pad,
            # Row tiles stream once per row tile; only the column features
            # restream every grid step.
            bytes_accessed=(grid[0] * tm * d_pad * itemsize
                            + grid[0] * grid[1] * tn * d_pad * itemsize
                            + 3 * n_pad * 4
                            + 3 * grid[0] * tm * 4
                            + 2 * n_pad * 4),
        ),
    )(x, x_t, t_col, c_col, t_rows, c_rows, sq_col, hsq_rows)

    # Padded rows are sliced off; the remaining mean matches SoftMarginLoss over
    # the rows that survive the PyTorch try/except.
    num = jnp.sum(sp[:n])
    den = jnp.sum(valid[:n])
    # NOTE: if no row has both a cross-camera positive and negative, den == 0
    # and this returns NaN; the PyTorch module would raise in that situation.
    return num / den


def _reference_loss(x, targets, cps):
    # Pure-JAX reference mirroring the PyTorch forward (valid rows only).
    xf = x.astype(jnp.float32)
    sq = jnp.sum(xf ** 2, axis=1, keepdims=True)
    dist = jnp.sqrt(jnp.clip(sq + sq.T - 2.0 * xf @ xf.T, 1e-12, None))
    same = targets[:, None] == targets[None, :]
    diffc = cps[:, None] != cps[None, :]
    pos = jnp.logical_and(same, diffc)
    neg = jnp.logical_and(~same, diffc)
    ap = jnp.max(jnp.where(pos, dist, -jnp.inf), axis=1)
    an = jnp.min(jnp.where(neg, dist, jnp.inf), axis=1)
    valid = jnp.logical_and(pos.any(axis=1), neg.any(axis=1))
    sp = jnp.logaddexp(0.0, ap - an)
    return jnp.sum(jnp.where(valid, sp, 0.0)) / jnp.sum(valid)


if __name__ == "__main__":
    key = jax.random.PRNGKey(0)
    n, feat_dim = 8, 32
    x = jax.random.normal(key, (n, feat_dim), dtype=jnp.float32)
    # 4 identities x 2 cameras -> every row has a cross-camera positive and negative.
    targets = jnp.array([0, 0, 1, 1, 2, 2, 3, 3], dtype=jnp.int32)
    cps = jnp.array([0, 1, 0, 1, 0, 1, 0, 1], dtype=jnp.int32)

    loss = jax.block_until_ready(triplet_loss(x, targets, cps))
    ref = _reference_loss(x, targets, cps)
    assert abs(float(loss) - float(ref)) < 1e-4, (float(loss), float(ref))
    # TODO(synk): the PyTorch try/except silently misaligns dist_ap/dist_an when only
    # one of the two minings fails for a row; here such rows are dropped consistently.
    print("KERNEL_OK")
</pallas_src>

<mosaic_0001>
module attributes {stable_mosaic.version = 11 : i64} {
  func.func @_triplet_loss_kernel(%arg0: i32, %arg1: i32, %arg2: memref<128x128xf32, #tpu.memory_space<vmem>>, %arg3: memref<128x128xf32, #tpu.memory_space<vmem>>, %arg4: memref<128x1xi32, #tpu.memory_space<vmem>>, %arg5: memref<128x1xi32, #tpu.memory_space<vmem>>, %arg6: memref<1x128xi32, #tpu.memory_space<vmem>>, %arg7: memref<1x128xi32, #tpu.memory_space<vmem>>, %arg8: memref<128x1xf32, #tpu.memory_space<vmem>>, %arg9: memref<1x128xf32, #tpu.memory_space<vmem>>, %arg10: memref<128x1xf32, #tpu.memory_space<vmem>>, %arg11: memref<128x1xf32, #tpu.memory_space<vmem>>, %arg12: memref<128x1xf32, #tpu.memory_space<vmem>>, %arg13: memref<128x1xf32, #tpu.memory_space<vmem>>) attributes {dimension_semantics = [#tpu.dimension_semantics<parallel>, #tpu.dimension_semantics<arbitrary>], iteration_bounds = array<i64: 1, 1>, scalar_prefetch = 0 : i64, scratch_operands = 2 : i64, tpu.core_type = #tpu.core_type<tc>, window_params = [{transform_indices = @transform_0, window_bounds = array<i64: 128, 128>}, {transform_indices = @transform_1, window_bounds = array<i64: 128, 128>}, {transform_indices = @transform_2, window_bounds = array<i64: 128, 1>}, {transform_indices = @transform_3, window_bounds = array<i64: 128, 1>}, {pipeline_mode = #tpu.pipeline_mode<synchronous>, transform_indices = @transform_4, window_bounds = array<i64: 1, 128>}, {pipeline_mode = #tpu.pipeline_mode<synchronous>, transform_indices = @transform_5, window_bounds = array<i64: 1, 128>}, {transform_indices = @transform_6, window_bounds = array<i64: 128, 1>}, {pipeline_mode = #tpu.pipeline_mode<synchronous>, transform_indices = @transform_7, window_bounds = array<i64: 1, 128>}, {transform_indices = @transform_8, window_bounds = array<i64: 128, 1>}, {transform_indices = @transform_9, window_bounds = array<i64: 128, 1>}]} {
    %c0_i32 = arith.constant 0 : i32
    %0 = arith.cmpi eq, %arg1, %c0_i32 : i32
    %1 = arith.extui %0 : i1 to i32
    %c0_i32_0 = arith.constant 0 : i32
    %2 = arith.cmpi ne, %1, %c0_i32_0 : i32
    scf.if %2 {
      %cst_26 = arith.constant -1.000000e+30 : f32
      %50 = vector.broadcast %cst_26 : f32 to vector<128x1xf32>
      %c0_27 = arith.constant 0 : index
      %c0_28 = arith.constant 0 : index
      %51 = vector.load %arg12[%c0_27, %c0_28] : memref<128x1xf32, #tpu.memory_space<vmem>>, vector<128x1xf32>
      tpu.vector_store %arg12[%c0_27, %c0_28], %50 {strides = array<i32>} : memref<128x1xf32, #tpu.memory_space<vmem>>, vector<128x1xf32>,
      %cst_29 = arith.constant 1.000000e+30 : f32
      %52 = vector.broadcast %cst_29 : f32 to vector<128x1xf32>
      %c0_30 = arith.constant 0 : index
      %c0_31 = arith.constant 0 : index
      %53 = vector.load %arg13[%c0_30, %c0_31] : memref<128x1xf32, #tpu.memory_space<vmem>>, vector<128x1xf32>
      tpu.vector_store %arg13[%c0_30, %c0_31], %52 {strides = array<i32>} : memref<128x1xf32, #tpu.memory_space<vmem>>, vector<128x1xf32>,
    } else {
    }
    %c0 = arith.constant 0 : index
    %c0_1 = arith.constant 0 : index
    %3 = vector.load %arg2[%c0, %c0_1] : memref<128x128xf32, #tpu.memory_space<vmem>>, vector<128x128xf32>
    %c0_2 = arith.constant 0 : index
    %c0_3 = arith.constant 0 : index
    %4 = vector.load %arg3[%c0_2, %c0_3] : memref<128x128xf32, #tpu.memory_space<vmem>>, vector<128x128xf32>
    %cst = arith.constant dense<0.000000e+00> : vector<128x128xf32>
    %5 = tpu.matmul %3, %4, %cst {dimension_numbers = #tpu.dot_dimension_numbers<[1], [0], [0], [1], [0, 0, 1, 1], [], []>} : vector<128x128xf32>, vector<128x128xf32>, vector<128x128xf32> -> vector<128x128xf32>
    %6 = arith.index_cast %arg1 : i32 to index
    %c0_4 = arith.constant 0 : index
    %7 = vector.load %arg9[%6, %c0_4] : memref<1x128xf32, #tpu.memory_space<vmem>>, vector<1x128xf32>
    %8 = arith.index_cast %arg1 : i32 to index
    %c0_5 = arith.constant 0 : index
    %9 = vector.load %arg6[%8, %c0_5] : memref<1x128xi32, #tpu.memory_space<vmem>>, vector<1x128xi32>
    %10 = arith.index_cast %arg1 : i32 to index
    %c0_6 = arith.constant 0 : index
    %11 = vector.load %arg7[%10, %c0_6] : memref<1x128xi32, #tpu.memory_space<vmem>>, vector<1x128xi32>
    %c0_7 = arith.constant 0 : index
    %c0_8 = arith.constant 0 : index
    %12 = vector.load %arg4[%c0_7, %c0_8] : memref<128x1xi32, #tpu.memory_space<vmem>>, vector<128x1xi32>
    %c0_9 = arith.constant 0 : index
    %c0_10 = arith.constant 0 : index
    %13 = vector.load %arg5[%c0_9, %c0_10] : memref<128x1xi32, #tpu.memory_space<vmem>>, vector<128x1xi32>
    %14 = vector.broadcast %7 : vector<1x128xf32> to vector<128x128xf32>
    %15 = arith.subf %14, %5 : vector<128x128xf32>
    %16 = tpu.iota {dimensions = array<i32: 1>} : vector<1x128xi32>
    %c128_i32 = arith.constant 128 : i32
    %17 = arith.muli %arg1, %c128_i32 : i32
    %18 = vector.broadcast %17 : i32 to vector<1x128xi32>
    %19 = arith.addi %16, %18 : vector<1x128xi32>
    %c8_i32 = arith.constant 8 : i32
    %20 = vector.broadcast %c8_i32 : i32 to vector<1x128xi32>
    %21 = arith.cmpi slt, %19, %20 : vector<1x128xi32>
    %22 = vector.broadcast %12 : vector<128x1xi32> to vector<128x128xi32>
    %23 = vector.broadcast %9 : vector<1x128xi32> to vector<128x128xi32>
    %24 = arith.cmpi eq, %22, %23 : vector<128x128xi32>
    %25 = vector.broadcast %13 : vector<128x1xi32> to vector<128x128xi32>
    %26 = vector.broadcast %11 : vector<1x128xi32> to vector<128x128xi32>
    %27 = arith.cmpi ne, %25, %26 : vector<128x128xi32>
    %28 = vector.broadcast %21 : vector<1x128xi1> to vector<128x128xi1>
    %29 = arith.andi %27, %28 : vector<128x128xi1>
    %30 = arith.andi %24, %29 : vector<128x128xi1>
    %cst_11 = arith.constant dense<true> : vector<128x128xi1>
    %31 = arith.xori %24, %cst_11 : vector<128x128xi1>
    %32 = arith.andi %31, %29 : vector<128x128xi1>
    %c0_12 = arith.constant 0 : index
    %c0_13 = arith.constant 0 : index
    %33 = vector.load %arg12[%c0_12, %c0_13] : memref<128x1xf32, #tpu.memory_space<vmem>>, vector<128x1xf32>
    %cst_14 = arith.constant -1.000000e+30 : f32
    %34 = vector.broadcast %cst_14 : f32 to vector<128x128xf32>
    %35 = arith.select %30, %15, %34 : vector<128x128xi1>, vector<128x128xf32>
    %cst_15 = arith.constant dense<0xFF800000> : vector<128xf32>
    %36 = vector.multi_reduction <maximumf>, %35, %cst_15 [1] : vector<128x128xf32> to vector<128xf32>
    %37 = vector.shape_cast %36 : vector<128xf32> to vector<128x1xf32>
    %38 = arith.maximumf %33, %37 : vector<128x1xf32>
    %c0_16 = arith.constant 0 : index
    %c0_17 = arith.constant 0 : index
    %39 = vector.load %arg12[%c0_16, %c0_17] : memref<128x1xf32, #tpu.memory_space<vmem>>, vector<128x1xf32>
    tpu.vector_store %arg12[%c0_16, %c0_17], %38 {strides = array<i32>} : memref<128x1xf32, #tpu.memory_space<vmem>>, vector<128x1xf32>,
    %c0_18 = arith.constant 0 : index
    %c0_19 = arith.constant 0 : index
    %40 = vector.load %arg13[%c0_18, %c0_19] : memref<128x1xf32, #tpu.memory_space<vmem>>, vector<128x1xf32>
    %cst_20 = arith.constant 1.000000e+30 : f32
    %41 = vector.broadcast %cst_20 : f32 to vector<128x128xf32>
    %42 = arith.select %32, %15, %41 : vector<128x128xi1>, vector<128x128xf32>
    %cst_21 = arith.constant dense<0x7F800000> : vector<128xf32>
    %43 = vector.multi_reduction <minimumf>, %42, %cst_21 [1] : vector<128x128xf32> to vector<128xf32>
    %44 = vector.shape_cast %43 : vector<128xf32> to vector<128x1xf32>
    %45 = arith.minimumf %40, %44 : vector<128x1xf32>
    %c0_22 = arith.constant 0 : index
    %c0_23 = arith.constant 0 : index
    %46 = vector.load %arg13[%c0_22, %c0_23] : memref<128x1xf32, #tpu.memory_space<vmem>>, vector<128x1xf32>
    tpu.vector_store %arg13[%c0_22, %c0_23], %45 {strides = array<i32>} : memref<128x1xf32, #tpu.memory_space<vmem>>, vector<128x1xf32>,
    %c0_i32_24 = arith.constant 0 : i32
    %47 = arith.cmpi eq, %arg1, %c0_i32_24 : i32
    %48 = arith.extui %47 : i1 to i32
    %c0_i32_25 = arith.constant 0 : i32
    %49 = arith.cmpi ne, %48, %c0_i32_25 : i32
    scf.if %49 {
      %c0_26 = arith.constant 0 : index
      %c0_27 = arith.constant 0 : index
      %50 = vector.load %arg12[%c0_26, %c0_27] : memref<128x1xf32, #tpu.memory_space<vmem>>, vector<128x1xf32>
      %c0_28 = arith.constant 0 : index
      %c0_29 = arith.constant 0 : index
      %51 = vector.load %arg13[%c0_28, %c0_29] : memref<128x1xf32, #tpu.memory_space<vmem>>, vector<128x1xf32>
      %cst_30 = arith.constant -5.000000e+29 : f32
      %52 = vector.broadcast %cst_30 : f32 to vector<128x1xf32>
      %53 = arith.cmpf ogt, %50, %52 : vector<128x1xf32>
      %cst_31 = arith.constant 5.000000e+29 : f32
      %54 = vector.broadcast %cst_31 : f32 to vector<128x1xf32>
      %55 = arith.cmpf olt, %51, %54 : vector<128x1xf32>
      %56 = arith.andi %53, %55 : vector<128x1xi1>
      %c0_32 = arith.constant 0 : index
      %c0_33 = arith.constant 0 : index
      %57 = vector.load %arg8[%c0_32, %c0_33] : memref<128x1xf32, #tpu.memory_space<vmem>>, vector<128x1xf32>
      %cst_34 = arith.constant 2.000000e+00 : f32
      %58 = vector.broadcast %cst_34 : f32 to vector<128x1xf32>
      %59 = arith.mulf %58, %50 : vector<128x1xf32>
      %60 = arith.addf %59, %57 : vector<128x1xf32>
      %cst_35 = arith.constant 9.99999996E-13 : f32
      %61 = vector.broadcast %cst_35 : f32 to vector<128x1xf32>
      %62 = arith.maximumf %60, %61 : vector<128x1xf32>
      %cst_36 = arith.constant 2.000000e+00 : f32
      %63 = vector.broadcast %cst_36 : f32 to vector<128x1xf32>
      %64 = arith.mulf %63, %51 : vector<128x1xf32>
      %65 = arith.addf %64, %57 : vector<128x1xf32>
      %cst_37 = arith.constant 9.99999996E-13 : f32
      %66 = vector.broadcast %cst_37 : f32 to vector<128x1xf32>
      %67 = arith.maximumf %65, %66 : vector<128x1xf32>
      %68 = math.sqrt %62 : vector<128x1xf32>
      %69 = math.sqrt %67 : vector<128x1xf32>
      %70 = arith.subf %68, %69 : vector<128x1xf32>
      %cst_38 = arith.constant 0.000000e+00 : f32
      %71 = vector.broadcast %cst_38 : f32 to vector<128x1xf32>
      %72 = arith.maximumf %70, %71 : vector<128x1xf32>
      %73 = math.absf %70 : vector<128x1xf32>
      %cst_39 = arith.constant 0.000000e+00 : f32
      %74 = vector.broadcast %cst_39 : f32 to vector<128x1xf32>
      %75 = arith.subf %74, %73 : vector<128x1xf32>
      %76 = math.exp %75 : vector<128x1xf32>
      %77 = math.log1p %76 : vector<128x1xf32>
      %78 = arith.addf %72, %77 : vector<128x1xf32>
      %cst_40 = arith.constant 0.000000e+00 : f32
      %79 = vector.broadcast %cst_40 : f32 to vector<128x1xf32>
      %80 = arith.select %56, %78, %79 : vector<128x1xi1>, vector<128x1xf32>
      %c0_41 = arith.constant 0 : index
      %c0_42 = arith.constant 0 : index
      %81 = vector.load %arg10[%c0_41, %c0_42] : memref<128x1xf32, #tpu.memory_space<vmem>>, vector<128x1xf32>
      tpu.vector_store %arg10[%c0_41, %c0_42], %80 {strides = array<i32>} : memref<128x1xf32, #tpu.memory_space<vmem>>, vector<128x1xf32>,
      %82 = arith.extui %56 : vector<128x1xi1> to vector<128x1xi32>
      %83 = arith.sitofp %82 : vector<128x1xi32> to vector<128x1xf32>
      %c0_43 = arith.constant 0 : index
      %c0_44 = arith.constant 0 : index
      %84 = vector.load %arg11[%c0_43, %c0_44] : memref<128x1xf32, #tpu.memory_space<vmem>>, vector<128x1xf32>
      tpu.vector_store %arg11[%c0_43, %c0_44], %83 {strides = array<i32>} : memref<128x1xf32, #tpu.memory_space<vmem>>, vector<128x1xf32>,
    } else {
    }
    return
  }
  func.func @transform_0(%arg0: i32, %arg1: i32) -> (i32, i32) {
    %c0_i32 = arith.constant 0 : i32
    %c0_i32_0 = arith.constant 0 : i32
    return %arg0, %c0_i32 : i32, i32
  }
  func.func @transform_1(%arg0: i32, %arg1: i32) -> (i32, i32) {
    %c0_i32 = arith.constant 0 : i32
    %c0_i32_0 = arith.constant 0 : i32
    return %c0_i32, %arg1 : i32, i32
  }
  func.func @transform_2(%arg0: i32, %arg1: i32) -> (i32, i32) {
    %c0_i32 = arith.constant 0 : i32
    %c0_i32_0 = arith.constant 0 : i32
    return %arg0, %c0_i32 : i32, i32
  }
  func.func @transform_3(%arg0: i32, %arg1: i32) -> (i32, i32) {
    %c0_i32 = arith.constant 0 : i32
    %c0_i32_0 = arith.constant 0 : i32
    return %arg0, %c0_i32 : i32, i32
  }
  func.func @transform_4(%arg0: i32, %arg1: i32) -> (i32, i32) {
    %c0_i32 = arith.constant 0 : i32
    %c0_i32_0 = arith.constant 0 : i32
    %c0_i32_1 = arith.constant 0 : i32
    return %c0_i32, %c0_i32_0 : i32, i32
  }
  func.func @transform_5(%arg0: i32, %arg1: i32) -> (i32, i32) {
    %c0_i32 = arith.constant 0 : i32
    %c0_i32_0 = arith.constant 0 : i32
    %c0_i32_1 = arith.constant 0 : i32
    return %c0_i32, %c0_i32_0 : i32, i32
  }
  func.func @transform_6(%arg0: i32, %arg1: i32) -> (i32, i32) {
    %c0_i32 = arith.constant 0 : i32
    %c0_i32_0 = arith.constant 0 : i32
    return %arg0, %c0_i32 : i32, i32
  }
  func.func @transform_7(%arg0: i32, %arg1: i32) -> (i32, i32) {
    %c0_i32 = arith.constant 0 : i32
    %c0_i32_0 = arith.constant 0 : i32
    %c0_i32_1 = arith.constant 0 : i32
    return %c0_i32, %c0_i32_0 : i32, i32
  }
  func.func @transform_8(%arg0: i32, %arg1: i32) -> (i32, i32) {
    %c0_i32 = arith.constant 0 : i32
    %c0_i32_0 = arith.constant 0 : i32
    return %arg0, %c0_i32 : i32, i32
  }
  func.func @transform_9(%arg0: i32, %arg1: i32) -> (i32, i32) {
    %c0_i32 = arith.constant 0 : i32
    %c0_i32_0 = arith.constant 0 : i32
    return %arg0, %c0_i32 : i32, i32
  }
}

</mosaic_0001>

<llo_original>
// kernel: triplet_loss.1
$region0: #{triplet_loss.1}
  #allocation0 [shape = 'u32[]', space=smem, size = 0x4, offset = 0x4, fixed_abs, tag = 'smem constant byte address 0x4 - core index']
  #allocation1 [shape = 'u32[144,128]{1,0:T(1,128)}', space=vmem, size = 0x12000, scoped, tag = 'internal scratch']
  #allocation2 [shape = 'f32[128,1]{1,0:T(8,128)}', space=vmem, size = 0x10000, scoped, tag = 'scratch operand']
  #allocation3 [shape = 'f32[128,1]{1,0:T(8,128)}', space=vmem, size = 0x10000, scoped, tag = 'scratch operand']
  %s0 = inlined_call_operand.vmem [shape: f32[128,128], index: 0, kind: input, shape index: {}]
  %s1 = inlined_call_operand.vmem [shape: f32[128,128], index: 1, kind: input, shape index: {}]
  %s2 = inlined_call_operand.vmem [shape: s32[128,1], index: 2, kind: input, shape index: {}]
  %s3 = inlined_call_operand.vmem [shape: s32[128,1], index: 3, kind: input, shape index: {}]
  %s4 = inlined_call_operand.vmem [shape: s32[1,128], index: 4, kind: input, shape index: {}]
  %s5 = inlined_call_operand.vmem [shape: s32[1,128], index: 5, kind: input, shape index: {}]
  %s6 = inlined_call_operand.vmem [shape: f32[128,1], index: 6, kind: input, shape index: {}]
  %s7 = inlined_call_operand.vmem [shape: f32[1,128], index: 7, kind: input, shape index: {}]
  %s8 = inlined_call_operand.vmem [shape: f32[128,1], index: 8, kind: output, shape index: {0}]
  %s9 = inlined_call_operand.vmem [shape: f32[128,1], index: 9, kind: output, shape index: {1}]
  %10 = xla_tuple %s8, %s9
  %s11 = sld [smem:[#allocation0]]
  $region58: #{triplet_loss.1} parent=0
    _
  %s13 = ssub.s32 1, %s11
  %s14 = scalar_select 0, %s13, %s11
  // Predicated region
  $region2: #{triplet_loss.1} parent=0 // pred_check
    _
  $region3: #{triplet_loss.1} parent=0 // pred_check_branch
    %16 = sbr.rel (0) target = $region5
  $region4: #{triplet_loss.1} parent=0 // pred_region
    _
  $region5: #{triplet_loss.1} parent=0 // pred_fallthru
    _
  // Predicated region
  $region6: #{triplet_loss.1} parent=0 // pred_check
    _
  $region7: #{triplet_loss.1} parent=0 // pred_check_branch
    %18 = sbr.rel (0) target = $region9
  $region8: #{triplet_loss.1} parent=0 // pred_region
    _
  $region9: #{triplet_loss.1} parent=0 // pred_fallthru
    _
  // Predicated region
  $region10: #{triplet_loss.1} parent=0 // pred_check
    _
  $region11: #{triplet_loss.1} parent=0 // pred_check_branch
    %20 = sbr.rel (0) target = $region13
  $region12: #{triplet_loss.1} parent=0 // pred_region
    _
  $region13: #{triplet_loss.1} parent=0 // pred_fallthru
    _
  // Predicated region
  $region14: #{triplet_loss.1} parent=0 // pred_check
    _
  $region15: #{triplet_loss.1} parent=0 // pred_check_branch
    %22 = sbr.rel (0) target = $region17
  $region16: #{triplet_loss.1} parent=0 // pred_region
    _
  $region17: #{triplet_loss.1} parent=0 // pred_fallthru
    _
  // Predicated region
  $region18: #{triplet_loss.1} parent=0 // pred_check
    _
  $region19: #{triplet_loss.1} parent=0 // pred_check_branch
    %24 = sbr.rel (0) target = $region21
  $region20: #{triplet_loss.1} parent=0 // pred_region
    _
  $region21: #{triplet_loss.1} parent=0 // pred_fallthru
    _
  // Predicated region
  $region22: #{triplet_loss.1} parent=0 // pred_check
    _
  $region23: #{triplet_loss.1} parent=0 // pred_check_branch
    %26 = sbr.rel (0) target = $region25
  $region24: #{triplet_loss.1} parent=0 // pred_region
    _
  $region25: #{triplet_loss.1} parent=0 // pred_fallthru
    _
  // Predicated region
  $region26: #{triplet_loss.1} parent=0 // pred_check
    _
  $region27: #{triplet_loss.1} parent=0 // pred_check_branch
    %28 = sbr.rel (0) target = $region29
  $region28: #{triplet_loss.1} parent=0 // pred_region
    _
  $region29: #{triplet_loss.1} parent=0 // pred_fallthru
    _
  // Predicated region
  $region30: #{triplet_loss.1} parent=0 // pred_check
    _
  $region31: #{triplet_loss.1} parent=0 // pred_check_branch
    %30 = sbr.rel (0) target = $region33
  $region32: #{triplet_loss.1} parent=0 // pred_region
    _
  $region33: #{triplet_loss.1} parent=0 // pred_fallthru
    _
  %p31 = scmp.eq.s32.totalorder 0, 0
  // Predicated region
  $region34: #{triplet_loss.1} parent=0 // pred_check
    %p32 = pneg %p31
  $region35: #{triplet_loss.1} parent=0 // pred_check_branch
    %34 = sbr.rel (%p32) target = $region37
  $region36: #{triplet_loss.1} parent=0 // pred_region
    %vm35 = vcmask 7168
    %36 = vst.msk [vmem:[#allocation2] sm:$0xff] %vm35, -1e+30
    %37 = vst.msk [vmem:[#allocation2 + $0x8] sm:$0xff] %vm35, -1e+30
    %38 = vst.msk [vmem:[#allocation2 + $0x10] sm:$0xff] %vm35, -1e+30
    %39 = vst.msk [vmem:[#allocation2 + $0x18] sm:$0xff] %vm35, -1e+30
    %40 = vst.msk [vmem:[#allocation2 + $0x20] sm:$0xff] %vm35, -1e+30
    %41 = vst.msk [vmem:[#allocation2 + $0x28] sm:$0xff] %vm35, -1e+30
    %42 = vst.msk [vmem:[#allocation2 + $0x30] sm:$0xff] %vm35, -1e+30
    %43 = vst.msk [vmem:[#allocation2 + $0x38] sm:$0xff] %vm35, -1e+30
    %44 = vst.msk [vmem:[#allocation2 + $0x40] sm:$0xff] %vm35, -1e+30
    %45 = vst.msk [vmem:[#allocation2 + $0x48] sm:$0xff] %vm35, -1e+30
    %46 = vst.msk [vmem:[#allocation2 + $0x50] sm:$0xff] %vm35, -1e+30
    %47 = vst.msk [vmem:[#allocation2 + $0x58] sm:$0xff] %vm35, -1e+30
    %48 = vst.msk [vmem:[#allocation2 + $0x60] sm:$0xff] %vm35, -1e+30
    %49 = vst.msk [vmem:[#allocation2 + $0x68] sm:$0xff] %vm35, -1e+30
    %50 = vst.msk [vmem:[#allocation2 + $0x70] sm:$0xff] %vm35, -1e+30
    %51 = vst.msk [vmem:[#allocation2 + $0x78] sm:$0xff] %vm35, -1e+30
    %52 = vst.msk [vmem:[#allocation3] sm:$0xff] %vm35, 1e+30
    %53 = vst.msk [vmem:[#allocation3 + $0x8] sm:$0xff] %vm35, 1e+30
    %54 = vst.msk [vmem:[#allocation3 + $0x10] sm:$0xff] %vm35, 1e+30
    %55 = vst.msk [vmem:[#allocation3 + $0x18] sm:$0xff] %vm35, 1e+30
    %56 = vst.msk [vmem:[#allocation3 + $0x20] sm:$0xff] %vm35, 1e+30
    %57 = vst.msk [vmem:[#allocation3 + $0x28] sm:$0xff] %vm35, 1e+30
    %58 = vst.msk [vmem:[#allocation3 + $0x30] sm:$0xff] %vm35, 1e+30
    %59 = vst.msk [vmem:[#allocation3 + $0x38] sm:$0xff] %vm35, 1e+30
    %60 = vst.msk [vmem:[#allocation3 + $0x40] sm:$0xff] %vm35, 1e+30
    %61 = vst.msk [vmem:[#allocation3 + $0x48] sm:$0xff] %vm35, 1e+30
    %62 = vst.msk [vmem:[#allocation3 + $0x50] sm:$0xff] %vm35, 1e+30
    %63 = vst.msk [vmem:[#allocation3 + $0x58] sm:$0xff] %vm35, 1e+30
    %64 = vst.msk [vmem:[#allocation3 + $0x60] sm:$0xff] %vm35, 1e+30
    %65 = vst.msk [vmem:[#allocation3 + $0x68] sm:$0xff] %vm35, 1e+30
    %66 = vst.msk [vmem:[#allocation3 + $0x70] sm:$0xff] %vm35, 1e+30
    %67 = vst.msk [vmem:[#allocation3 + $0x78] sm:$0xff] %vm35, 1e+30
  $region37: #{triplet_loss.1} parent=0 // pred_fallthru
    _
  %v68 = vld [vmem:[%s0] sm:$0xff]
  %v69 = vld [vmem:[%s0 + $0x8] sm:$0xff]
  %v70 = vld [vmem:[%s0 + $0x10] sm:$0xff]
  %v71 = vld [vmem:[%s0 + $0x18] sm:$0xff]
  %v72 = vld [vmem:[%s0 + $0x20] sm:$0xff]
  %v73 = vld [vmem:[%s0 + $0x28] sm:$0xff]
  %v74 = vld [vmem:[%s0 + $0x30] sm:$0xff]
  %v75 = vld [vmem:[%s0 + $0x38] sm:$0xff]
  %v76 = vld [vmem:[%s0 + $0x40] sm:$0xff]
  %v77 = vld [vmem:[%s0 + $0x48] sm:$0xff]
  %v78 = vld [vmem:[%s0 + $0x50] sm:$0xff]
  %v79 = vld [vmem:[%s0 + $0x58] sm:$0xff]
  %v80 = vld [vmem:[%s0 + $0x60] sm:$0xff]
  %v81 = vld [vmem:[%s0 + $0x68] sm:$0xff]
  %v82 = vld [vmem:[%s0 + $0x70] sm:$0xff]
  %v83 = vld [vmem:[%s0 + $0x78] sm:$0xff]
  %v84 = vld [vmem:[%s1] sm:$0xff]
  %v85 = vld [vmem:[%s1 + $0x8] sm:$0xff]
  %v86 = vld [vmem:[%s1 + $0x10] sm:$0xff]
  %v87 = vld [vmem:[%s1 + $0x18] sm:$0xff]
  %v88 = vld [vmem:[%s1 + $0x20] sm:$0xff]
  %v89 = vld [vmem:[%s1 + $0x28] sm:$0xff]
  %v90 = vld [vmem:[%s1 + $0x30] sm:$0xff]
  %v91 = vld [vmem:[%s1 + $0x38] sm:$0xff]
  %v92 = vld [vmem:[%s1 + $0x40] sm:$0xff]
  %v93 = vld [vmem:[%s1 + $0x48] sm:$0xff]
  %v94 = vld [vmem:[%s1 + $0x50] sm:$0xff]
  %v95 = vld [vmem:[%s1 + $0x58] sm:$0xff]
  %v96 = vld [vmem:[%s1 + $0x60] sm:$0xff]
  %v97 = vld [vmem:[%s1 + $0x68] sm:$0xff]
  %v98 = vld [vmem:[%s1 + $0x70] sm:$0xff]
  %v99 = vld [vmem:[%s1 + $0x78] sm:$0xff]
  %100 = vmatprep.subr.mxu0 0.0
  %101 = vmatpush1.msra.mxu0 %v84
  %102 = vmatprep.subr.mxu0 0.0
  %103 = vmatpush1.msra.mxu0 %v85
  %104 = vmatprep.subr.mxu0 0.0
  %105 = vmatpush1.msra.mxu0 %v86
  %106 = vmatprep.subr.mxu0 0.0
  %107 = vmatpush1.msra.mxu0 %v87
  %108 = vmatprep.subr.mxu0 0.0
  %109 = vmatpush1.msra.mxu0 %v88
  %110 = vmatprep.subr.mxu0 0.0
  %111 = vmatpush1.msra.mxu0 %v89
  %112 = vmatprep.subr.mxu0 0.0
  %113 = vmatpush1.msra.mxu0 %v90
  %114 = vmatprep.subr.mxu0 0.0
  %115 = vmatpush1.msra.mxu0 %v91
  %116 = vmatprep.subr.mxu0 0.0
  %117 = vmatpush1.msra.mxu0 %v92
  %118 = vmatprep.subr.mxu0 0.0
  %119 = vmatpush1.msra.mxu0 %v93
  %120 = vmatprep.subr.mxu0 0.0
  %121 = vmatpush1.msra.mxu0 %v94
  %122 = vmatprep.subr.mxu0 0.0
  %123 = vmatpush1.msra.mxu0 %v95
  %124 = vmatprep.subr.mxu0 0.0
  %125 = vmatpush1.msra.mxu0 %v96
  %126 = vmatprep.subr.mxu0 0.0
  %127 = vmatpush1.msra.mxu0 %v97
  %128 = vmatprep.subr.mxu0 0.0
  %129 = vmatpush1.msra.mxu0 %v98
  %130 = vmatprep.subr.mxu0 0.0
  %131 = vmatpush1.msra.mxu0 %v99
  %132 = vmatprep.subr.mxu0 0.0
  %133 = vmatpush1.msra.mxu0 0.0
  %134 = vmatprep.subr.mxu0 0.0
  %135 = vmatpush1.msra.mxu0 0.0
  %136 = vmatprep.subr.mxu0 0.0
  %137 = vmatpush1.msra.mxu0 0.0
  %138 = vmatprep.subr.mxu0 0.0
  %139 = vmatpush1.msra.mxu0 0.0
  %140 = vmatprep.subr.mxu0 0.0
  %141 = vmatpush1.msra.mxu0 0.0
  %142 = vmatprep.subr.mxu0 0.0
  %143 = vmatpush1.msra.mxu0 0.0
  %144 = vmatprep.subr.mxu0 0.0
  %145 = vmatpush1.msra.mxu0 0.0
  %146 = vmatprep.subr.mxu0 0.0
  %147 = vmatpush1.msra.mxu0 0.0
  %148 = vmatprep.subr.mxu0 0.0
  %149 = vmatpush1.msra.mxu0 0.0
  %150 = vmatprep.subr.mxu0 0.0
  %151 = vmatpush1.msra.mxu0 0.0
  %152 = vmatprep.subr.mxu0 0.0
  %153 = vmatpush1.msra.mxu0 0.0
  %154 = vmatprep.subr.mxu0 0.0
  %155 = vmatpush1.msra.mxu0 0.0
  %156 = vmatprep.subr.mxu0 0.0
  %157 = vmatpush1.msra.mxu0 0.0
  %158 = vmatprep.subr.mxu0 0.0
  %159 = vmatpush1.msra.mxu0 0.0
  %160 = vmatprep.subr.mxu0 0.0
  %161 = vmatpush1.msra.mxu0 0.0
  %162 = vmatprep.subr.mxu0 0.0
  %163 = vmatpush1.msra.mxu0 0.0
  %164 = vmatprep.mubr.f32.mxu0 0.0
  %165 = vmatmul.mubr.f32.gmra.mrb[0].mxu0 %v68
  %v166 = vpop.f32.mrb[0].mxu0
  %v167 = vadd.f32 0.0, %v166
  %v168 = vpop.f32.mrb[0].mxu0
  %169 = vmatprep.mubr.f32.mxu0 0.0
  %170 = vmatmul.mubr.f32.gmra.mrb[0].mxu0 %v69
  %v171 = vpop.f32.mrb[0].mxu0
  %v172 = vadd.f32 0.0, %v171
  %v173 = vpop.f32.mrb[0].mxu0
  %174 = vmatprep.mubr.f32.mxu0 0.0
  %175 = vmatmul.mubr.f32.gmra.mrb[0].mxu0 %v70
  %v176 = vpop.f32.mrb[0].mxu0
  %v177 = vadd.f32 0.0, %v176
  %v178 = vpop.f32.mrb[0].mxu0
  %179 = vmatprep.mubr.f32.mxu0 0.0
  %180 = vmatmul.mubr.f32.gmra.mrb[0].mxu0 %v71
  %v181 = vpop.f32.mrb[0].mxu0
  %v182 = vadd.f32 0.0, %v181
  %v183 = vpop.f32.mrb[0].mxu0
  %184 = vmatprep.mubr.f32.mxu0 0.0
  %185 = vmatmul.mubr.f32.gmra.mrb[0].mxu0 %v72
  %v186 = vpop.f32.mrb[0].mxu0
  %v187 = vadd.f32 0.0, %v186
  %v188 = vpop.f32.mrb[0].mxu0
  %189 = vmatprep.mubr.f32.mxu0 0.0
  %190 = vmatmul.mubr.f32.gmra.mrb[0].mxu0 %v73
  %v191 = vpop.f32.mrb[0].mxu0
  %v192 = vadd.f32 0.0, %v191
  %v193 = vpop.f32.mrb[0].mxu0
  %194 = vmatprep.mubr.f32.mxu0 0.0
  %195 = vmatmul.mubr.f32.gmra.mrb[0].mxu0 %v74
  %v196 = vpop.f32.mrb[0].mxu0
  %v197 = vadd.f32 0.0, %v196
  %v198 = vpop.f32.mrb[0].mxu0
  %199 = vmatprep.mubr.f32.mxu0 0.0
  %200 = vmatmul.mubr.f32.gmra.mrb[0].mxu0 %v75
  %v201 = vpop.f32.mrb[0].mxu0
  %v202 = vadd.f32 0.0, %v201
  %v203 = vpop.f32.mrb[0].mxu0
  %204 = vmatprep.mubr.f32.mxu0 0.0
  %205 = vmatmul.mubr.f32.gmra.mrb[0].mxu0 %v76
  %v206 = vpop.f32.mrb[0].mxu0
  %v207 = vadd.f32 0.0, %v206
  %v208 = vpop.f32.mrb[0].mxu0
  %209 = vmatprep.mubr.f32.mxu0 0.0
  %210 = vmatmul.mubr.f32.gmra.mrb[0].mxu0 %v77
  %v211 = vpop.f32.mrb[0].mxu0
  %v212 = vadd.f32 0.0, %v211
  %v213 = vpop.f32.mrb[0].mxu0
  %214 = vmatprep.mubr.f32.mxu0 0.0
  %215 = vmatmul.mubr.f32.gmra.mrb[0].mxu0 %v78
  %v216 = vpop.f32.mrb[0].mxu0
  %v217 = vadd.f32 0.0, %v216
  %v218 = vpop.f32.mrb[0].mxu0
  %219 = vmatprep.mubr.f32.mxu0 0.0
  %220 = vmatmul.mubr.f32.gmra.mrb[0].mxu0 %v79
  %v221 = vpop.f32.mrb[0].mxu0
  %v222 = vadd.f32 0.0, %v221
  %v223 = vpop.f32.mrb[0].mxu0
  %224 = vmatprep.mubr.f32.mxu0 0.0
  %225 = vmatmul.mubr.f32.gmra.mrb[0].mxu0 %v80
  %v226 = vpop.f32.mrb[0].mxu0
  %v227 = vadd.f32 0.0, %v226
  %v228 = vpop.f32.mrb[0].mxu0
  %229 = vmatprep.mubr.f32.mxu0 0.0
  %230 = vmatmul.mubr.f32.gmra.mrb[0].mxu0 %v81
  %v231 = vpop.f32.mrb[0].mxu0
  %v232 = vadd.f32 0.0, %v231
  %v233 = vpop.f32.mrb[0].mxu0
  %234 = vmatprep.mubr.f32.mxu0 0.0
  %235 = vmatmul.mubr.f32.gmra.mrb[0].mxu0 %v82
  %v236 = vpop.f32.mrb[0].mxu0
  %v237 = vadd.f32 0.0, %v236
  %v238 = vpop.f32.mrb[0].mxu0
  %239 = vmatprep.mubr.f32.mxu0 0.0
  %240 = vmatmul.mubr.f32.gmra.mrb[0].mxu0 %v83
  %v241 = vpop.f32.mrb[0].mxu0
  %v242 = vadd.f32 0.0, %v241
  %v243 = vpop.f32.mrb[0].mxu0
  %244 = vdwg.mxu0
  %v245 = vld [vmem:[%s7] sm:$0x1]
  %v246 = vld [vmem:[%s4] sm:$0x1]
  %v247 = vld [vmem:[%s5] sm:$0x1]
  %v248 = vld [vmem:[%s2] sm:$0xff]
  %v249 = vld [vmem:[%s2 + $0x8] sm:$0xff]
  %v250 = vld [vmem:[%s2 + $0x10] sm:$0xff]
  %v251 = vld [vmem:[%s2 + $0x18] sm:$0xff]
  %v252 = vld [vmem:[%s2 + $0x20] sm:$0xff]
  %v253 = vld [vmem:[%s2 + $0x28] sm:$0xff]
  %v254 = vld [vmem:[%s2 + $0x30] sm:$0xff]
  %v255 = vld [vmem:[%s2 + $0x38] sm:$0xff]
  %v256 = vld [vmem:[%s2 + $0x40] sm:$0xff]
  %v257 = vld [vmem:[%s2 + $0x48] sm:$0xff]
  %v258 = vld [vmem:[%s2 + $0x50] sm:$0xff]
  %v259 = vld [vmem:[%s2 + $0x58] sm:$0xff]
  %v260 = vld [vmem:[%s2 + $0x60] sm:$0xff]
  %v261 = vld [vmem:[%s2 + $0x68] sm:$0xff]
  %v262 = vld [vmem:[%s2 + $0x70] sm:$0xff]
  %v263 = vld [vmem:[%s2 + $0x78] sm:$0xff]
  %v264 = vld [vmem:[%s3] sm:$0xff]
  %v265 = vld [vmem:[%s3 + $0x8] sm:$0xff]
  %v266 = vld [vmem:[%s3 + $0x10] sm:$0xff]
  %v267 = vld [vmem:[%s3 + $0x18] sm:$0xff]
  %v268 = vld [vmem:[%s3 + $0x20] sm:$0xff]
  %v269 = vld [vmem:[%s3 + $0x28] sm:$0xff]
  %v270 = vld [vmem:[%s3 + $0x30] sm:$0xff]
  %v271 = vld [vmem:[%s3 + $0x38] sm:$0xff]
  %v272 = vld [vmem:[%s3 + $0x40] sm:$0xff]
  %v273 = vld [vmem:[%s3 + $0x48] sm:$0xff]
  %v274 = vld [vmem:[%s3 + $0x50] sm:$0xff]
  %v275 = vld [vmem:[%s3 + $0x58] sm:$0xff]
  %v276 = vld [vmem:[%s3 + $0x60] sm:$0xff]
  %v277 = vld [vmem:[%s3 + $0x68] sm:$0xff]
  %v278 = vld [vmem:[%s3 + $0x70] sm:$0xff]
  %v279 = vld [vmem:[%s3 + $0x78] sm:$0xff]
  %v281 = vlaneseq
  %v282 = vshrl.u32 %v281, 7
  %v283 = vsub.s32 0, %v282
  %v284 = vrot.slane %v245, %v283
  %v286 = vsub.f32 %v284, %v167
  %v287 = vsub.f32 %v284, %v172
  %v288 = vsub.f32 %v284, %v177
  %v289 = vsub.f32 %v284, %v182
  %v290 = vsub.f32 %v284, %v187
  %v291 = vsub.f32 %v284, %v192
  %v292 = vsub.f32 %v284, %v197
  %v293 = vsub.f32 %v284, %v202
  %v294 = vsub.f32 %v284, %v207
  %v295 = vsub.f32 %v284, %v212
  %v296 = vsub.f32 %v284, %v217
  %v297 = vsub.f32 %v284, %v222
  %v298 = vsub.f32 %v284, %v227
  %v299 = vsub.f32 %v284, %v232
  %v300 = vsub.f32 %v284, %v237
  %v301 = vsub.f32 %v284, %v242
  %v302 = vlaneseq
  %v303 = vand.u32 %v302, 127
  %s304 = smul.u32 0, 128
  %v305 = vstv %s304
  %v306 = vadd.s32 %v303, %v305
  %vm307 = vcmp.lt.s32.totalorder %v306, 8
  %308 = vset.pattern.permute.xlu0 0
  %309 = vperm.xlu0 %308, %v248
  %v310 = vpop.permute.xlu0 %309
  %311 = vset.pattern.permute.xlu0 0
  %312 = vperm.xlu0 %311, %v249
  %v313 = vpop.permute.xlu0 %312
  %314 = vset.pattern.permute.xlu0 0
  %315 = vperm.xlu0 %314, %v250
  %v316 = vpop.permute.xlu0 %315
  %317 = vset.pattern.permute.xlu0 0
  %318 = vperm.xlu0 %317, %v251
  %v319 = vpop.permute.xlu0 %318
  %320 = vset.pattern.permute.xlu0 0
  %321 = vperm.xlu0 %320, %v252
  %v322 = vpop.permute.xlu0 %321
  %323 = vset.pattern.permute.xlu0 0
  %324 = vperm.xlu0 %323, %v253
  %v325 = vpop.permute.xlu0 %324
  %326 = vset.pattern.permute.xlu0 0
  %327 = vperm.xlu0 %326, %v254
  %v328 = vpop.permute.xlu0 %327
  %329 = vset.pattern.permute.xlu0 0
  %330 = vperm.xlu0 %329, %v255
  %v331 = vpop.permute.xlu0 %330
  %332 = vset.pattern.permute.xlu0 0
  %333 = vperm.xlu0 %332, %v256
  %v334 = vpop.permute.xlu0 %333
  %335 = vset.pattern.permute.xlu0 0
  %336 = vperm.xlu0 %335, %v257
  %v337 = vpop.permute.xlu0 %336
  %338 = vset.pattern.permute.xlu0 0
  %339 = vperm.xlu0 %338, %v258
  %v340 = vpop.permute.xlu0 %339
  %341 = vset.pattern.permute.xlu0 0
  %342 = vperm.xlu0 %341, %v259
  %v343 = vpop.permute.xlu0 %342
  %344 = vset.pattern.permute.xlu0 0
  %345 = vperm.xlu0 %344, %v260
  %v346 = vpop.permute.xlu0 %345
  %347 = vset.pattern.permute.xlu0 0
  %348 = vperm.xlu0 %347, %v261
  %v349 = vpop.permute.xlu0 %348
  %350 = vset.pattern.permute.xlu0 0
  %351 = vperm.xlu0 %350, %v262
  %v352 = vpop.permute.xlu0 %351
  %353 = vset.pattern.permute.xlu0 0
  %354 = vperm.xlu0 %353, %v263
  %v355 = vpop.permute.xlu0 %354
  %v356 = vlaneseq
  %v357 = vshrl.u32 %v356, 7
  %v358 = vsub.s32 0, %v357
  %v359 = vrot.slane %v246, %v358
  %vm360 = vcmp.eq.s32.totalorder %v310, %v359
  %vm361 = vcmp.eq.s32.totalorder %v313, %v359
  %vm362 = vcmp.eq.s32.totalorder %v316, %v359
  %vm363 = vcmp.eq.s32.totalorder %v319, %v359
  %vm364 = vcmp.eq.s32.totalorder %v322, %v359
  %vm365 = vcmp.eq.s32.totalorder %v325, %v359
  %vm366 = vcmp.eq.s32.totalorder %v328, %v359
  %vm367 = vcmp.eq.s32.totalorder %v331, %v359
  %vm368 = vcmp.eq.s32.totalorder %v334, %v359
  %vm369 = vcmp.eq.s32.totalorder %v337, %v359
  %vm370 = vcmp.eq.s32.totalorder %v340, %v359
  %vm371 = vcmp.eq.s32.totalorder %v343, %v359
  %vm372 = vcmp.eq.s32.totalorder %v346, %v359
  %vm373 = vcmp.eq.s32.totalorder %v349, %v359
  %vm374 = vcmp.eq.s32.totalorder %v352, %v359
  %vm375 = vcmp.eq.s32.totalorder %v355, %v359
  %376 = vset.pattern.permute.xlu0 0
  %377 = vperm.xlu0 %376, %v264
  %v378 = vpop.permute.xlu0 %377
  %379 = vset.pattern.permute.xlu0 0
  %380 = vperm.xlu0 %379, %v265
  %v381 = vpop.permute.xlu0 %380
  %382 = vset.pattern.permute.xlu0 0
  %383 = vperm.xlu0 %382, %v266
  %v384 = vpop.permute.xlu0 %383
  %385 = vset.pattern.permute.xlu0 0
  %386 = vperm.xlu0 %385, %v267
  %v387 = vpop.permute.xlu0 %386
  %388 = vset.pattern.permute.xlu0 0
  %389 = vperm.xlu0 %388, %v268
  %v390 = vpop.permute.xlu0 %389
  %391 = vset.pattern.permute.xlu0 0
  %392 = vperm.xlu0 %391, %v269
  %v393 = vpop.permute.xlu0 %392
  %394 = vset.pattern.permute.xlu0 0
  %395 = vperm.xlu0 %394, %v270
  %v396 = vpop.permute.xlu0 %395
  %397 = vset.pattern.permute.xlu0 0
  %398 = vperm.xlu0 %397, %v271
  %v399 = vpop.permute.xlu0 %398
  %400 = vset.pattern.permute.xlu0 0
  %401 = vperm.xlu0 %400, %v272
  %v402 = vpop.permute.xlu0 %401
  %403 = vset.pattern.permute.xlu0 0
  %404 = vperm.xlu0 %403, %v273
  %v405 = vpop.permute.xlu0 %404
  %406 = vset.pattern.permute.xlu0 0
  %407 = vperm.xlu0 %406, %v274
  %v408 = vpop.permute.xlu0 %407
  %409 = vset.pattern.permute.xlu0 0
  %410 = vperm.xlu0 %409, %v275
  %v411 = vpop.permute.xlu0 %410
  %412 = vset.pattern.permute.xlu0 0
  %413 = vperm.xlu0 %412, %v276
  %v414 = vpop.permute.xlu0 %413
  %415 = vset.pattern.permute.xlu0 0
  %416 = vperm.xlu0 %415, %v277
  %v417 = vpop.permute.xlu0 %416
  %418 = vset.pattern.permute.xlu0 0
  %419 = vperm.xlu0 %418, %v278
  %v420 = vpop.permute.xlu0 %419
  %421 = vset.pattern.permute.xlu0 0
  %422 = vperm.xlu0 %421, %v279
  %v423 = vpop.permute.xlu0 %422
  %v424 = vlaneseq
  %v425 = vshrl.u32 %v424, 7
  %v426 = vsub.s32 0, %v425
  %v427 = vrot.slane %v247, %v426
  %vm428 = vcmp.ne.s32.totalorder %v378, %v427
  %vm429 = vcmp.ne.s32.totalorder %v381, %v427
  %vm430 = vcmp.ne.s32.totalorder %v384, %v427
  %vm431 = vcmp.ne.s32.totalorder %v387, %v427
  %vm432 = vcmp.ne.s32.totalorder %v390, %v427
  %vm433 = vcmp.ne.s32.totalorder %v393, %v427
  %vm434 = vcmp.ne.s32.totalorder %v396, %v427
  %vm435 = vcmp.ne.s32.totalorder %v399, %v427
  %vm436 = vcmp.ne.s32.totalorder %v402, %v427
  %vm437 = vcmp.ne.s32.totalorder %v405, %v427
  %vm438 = vcmp.ne.s32.totalorder %v408, %v427
  %vm439 = vcmp.ne.s32.totalorder %v411, %v427
  %vm440 = vcmp.ne.s32.totalorder %v414, %v427
  %vm441 = vcmp.ne.s32.totalorder %v417, %v427
  %vm442 = vcmp.ne.s32.totalorder %v420, %v427
  %vm443 = vcmp.ne.s32.totalorder %v423, %v427
  %v444 = vsel %vm307, 1, 0
  %vm445 = vcmp.eq.s32.totalorder %v444, 1
  %vm446 = vmand %vm428, %vm445
  %vm447 = vmand %vm429, %vm445
  %vm448 = vmand %vm430, %vm445
  %vm449 = vmand %vm431, %vm445
  %vm450 = vmand %vm432, %vm445
  %vm451 = vmand %vm433, %vm445
  %vm452 = vmand %vm434, %vm445
  %vm453 = vmand %vm435, %vm445
  %vm454 = vmand %vm436, %vm445
  %vm455 = vmand %vm437, %vm445
  %vm456 = vmand %vm438, %vm445
  %vm457 = vmand %vm439, %vm445
  %vm458 = vmand %vm440, %vm445
  %vm459 = vmand %vm441, %vm445
  %vm460 = vmand %vm442, %vm445
  %vm461 = vmand %vm443, %vm445
  %vm462 = vmand %vm360, %vm446
  %vm463 = vmand %vm361, %vm447
  %vm464 = vmand %vm362, %vm448
  %vm465 = vmand %vm363, %vm449
  %vm466 = vmand %vm364, %vm450
  %vm467 = vmand %vm365, %vm451
  %vm468 = vmand %vm366, %vm452
  %vm469 = vmand %vm367, %vm453
  %vm470 = vmand %vm368, %vm454
  %vm471 = vmand %vm369, %vm455
  %vm472 = vmand %vm370, %vm456
  %vm473 = vmand %vm371, %vm457
  %vm474 = vmand %vm372, %vm458
  %vm475 = vmand %vm373, %vm459
  %vm476 = vmand %vm374, %vm460
  %vm477 = vmand %vm375, %vm461
  %vm478 = vmxor %vm360, 1
  %vm479 = vmxor %vm361, 1
  %vm480 = vmxor %vm362, 1
  %vm481 = vmxor %vm363, 1
  %vm482 = vmxor %vm364, 1
  %vm483 = vmxor %vm365, 1
  %vm484 = vmxor %vm366, 1
  %vm485 = vmxor %vm367, 1
  %vm486 = vmxor %vm368, 1
  %vm487 = vmxor %vm369, 1
  %vm488 = vmxor %vm370, 1
  %vm489 = vmxor %vm371, 1
  %vm490 = vmxor %vm372, 1
  %vm491 = vmxor %vm373, 1
  %vm492 = vmxor %vm374, 1
  %vm493 = vmxor %vm375, 1
  %vm494 = vmand %vm478, %vm446
  %vm495 = vmand %vm479, %vm447
  %vm496 = vmand %vm480, %vm448
  %vm497 = vmand %vm481, %vm449
  %vm498 = vmand %vm482, %vm450
  %vm499 = vmand %vm483, %vm451
  %vm500 = vmand %vm484, %vm452
  %vm501 = vmand %vm485, %vm453
  %vm502 = vmand %vm486, %vm454
  %vm503 = vmand %vm487, %vm455
  %vm504 = vmand %vm488, %vm456
  %vm505 = vmand %vm489, %vm457
  %vm506 = vmand %vm490, %vm458
  %vm507 = vmand %vm491, %vm459
  %vm508 = vmand %vm492, %vm460
  %vm509 = vmand %vm493, %vm461
  %v510 = vld [vmem:[#allocation2] sm:$0xff]
  %v511 = vld [vmem:[#allocation2 + $0x8] sm:$0xff]
  %v512 = vld [vmem:[#allocation2 + $0x10] sm:$0xff]
  %v513 = vld [vmem:[#allocation2 + $0x18] sm:$0xff]
  %v514 = vld [vmem:[#allocation2 + $0x20] sm:$0xff]
  %v515 = vld [vmem:[#allocation2 + $0x28] sm:$0xff]
  %v516 = vld [vmem:[#allocation2 + $0x30] sm:$0xff]
  %v517 = vld [vmem:[#allocation2 + $0x38] sm:$0xff]
  %v518 = vld [vmem:[#allocation2 + $0x40] sm:$0xff]
  %v519 = vld [vmem:[#allocation2 + $0x48] sm:$0xff]
  %v520 = vld [vmem:[#allocation2 + $0x50] sm:$0xff]
  %v521 = vld [vmem:[#allocation2 + $0x58] sm:$0xff]
  %v522 = vld [vmem:[#allocation2 + $0x60] sm:$0xff]
  %v523 = vld [vmem:[#allocation2 + $0x68] sm:$0xff]
  %v524 = vld [vmem:[#allocation2 + $0x70] sm:$0xff]
  %v525 = vld [vmem:[#allocation2 + $0x78] sm:$0xff]
  %v526 = vsel %vm462, %v286, -1e+30
  %v527 = vsel %vm463, %v287, -1e+30
  %v528 = vsel %vm464, %v288, -1e+30
  %v529 = vsel %vm465, %v289, -1e+30
  %v530 = vsel %vm466, %v290, -1e+30
  %v531 = vsel %vm467, %v291, -1e+30
  %v532 = vsel %vm468, %v292, -1e+30
  %v533 = vsel %vm469, %v293, -1e+30
  %v534 = vsel %vm470, %v294, -1e+30
  %v535 = vsel %vm471, %v295, -1e+30
  %v536 = vsel %vm472, %v296, -1e+30
  %v537 = vsel %vm473, %v297, -1e+30
  %v538 = vsel %vm474, %v298, -1e+30
  %v539 = vsel %vm475, %v299, -1e+30
  %v540 = vsel %vm476, %v300, -1e+30
  %v541 = vsel %vm477, %v301, -1e+30
  %542 = vmax.xlane.f32.xlu0 %v526
  %v543 = vpop.xlane.xlu0 %542
  %544 = vmax.xlane.f32.xlu0 %v527
  %v545 = vpop.xlane.xlu0 %544
  %546 = vmax.xlane.f32.xlu0 %v528
  %v547 = vpop.xlane.xlu0 %546
  %548 = vmax.xlane.f32.xlu0 %v529
  %v549 = vpop.xlane.xlu0 %548
  %550 = vmax.xlane.f32.xlu0 %v530
  %v551 = vpop.xlane.xlu0 %550
  %552 = vmax.xlane.f32.xlu0 %v531
  %v553 = vpop.xlane.xlu0 %552
  %554 = vmax.xlane.f32.xlu0 %v532
  %v555 = vpop.xlane.xlu0 %554
  %556 = vmax.xlane.f32.xlu0 %v533
  %v557 = vpop.xlane.xlu0 %556
  %558 = vmax.xlane.f32.xlu0 %v534
  %v559 = vpop.xlane.xlu0 %558
  %560 = vmax.xlane.f32.xlu0 %v535
  %v561 = vpop.xlane.xlu0 %560
  %562 = vmax.xlane.f32.xlu0 %v536
  %v563 = vpop.xlane.xlu0 %562
  %564 = vmax.xlane.f32.xlu0 %v537
  %v565 = vpop.xlane.xlu0 %564
  %566 = vmax.xlane.f32.xlu0 %v538
  %v567 = vpop.xlane.xlu0 %566
  %568 = vmax.xlane.f32.xlu0 %v539
  %v569 = vpop.xlane.xlu0 %568
  %570 = vmax.xlane.f32.xlu0 %v540
  %v571 = vpop.xlane.xlu0 %570
  %572 = vmax.xlane.f32.xlu0 %v541
  %v573 = vpop.xlane.xlu0 %572
  %v574 = vmax.f32 %v510, %v543
  %v575 = vmax.f32 %v511, %v545
  %v576 = vmax.f32 %v512, %v547
  %v577 = vmax.f32 %v513, %v549
  %v578 = vmax.f32 %v514, %v551
  %v579 = vmax.f32 %v515, %v553
  %v580 = vmax.f32 %v516, %v555
  %v581 = vmax.f32 %v517, %v557
  %v582 = vmax.f32 %v518, %v559
  %v583 = vmax.f32 %v519, %v561
  %v584 = vmax.f32 %v520, %v563
  %v585 = vmax.f32 %v521, %v565
  %v586 = vmax.f32 %v522, %v567
  %v587 = vmax.f32 %v523, %v569
  %v588 = vmax.f32 %v524, %v571
  %v589 = vmax.f32 %v525, %v573
  %vm590 = vcmask 7168
  %591 = vst.msk [vmem:[#allocation2] sm:$0xff] %vm590, %v574
  %592 = vst.msk [vmem:[#allocation2 + $0x8] sm:$0xff] %vm590, %v575
  %593 = vst.msk [vmem:[#allocation2 + $0x10] sm:$0xff] %vm590, %v576
  %594 = vst.msk [vmem:[#allocation2 + $0x18] sm:$0xff] %vm590, %v577
  %595 = vst.msk [vmem:[#allocation2 + $0x20] sm:$0xff] %vm590, %v578
  %596 = vst.msk [vmem:[#allocation2 + $0x28] sm:$0xff] %vm590, %v579
  %597 = vst.msk [vmem:[#allocation2 + $0x30] sm:$0xff] %vm590, %v580
  %598 = vst.msk [vmem:[#allocation2 + $0x38] sm:$0xff] %vm590, %v581
  %599 = vst.msk [vmem:[#allocation2 + $0x40] sm:$0xff] %vm590, %v582
  %600 = vst.msk [vmem:[#allocation2 + $0x48] sm:$0xff] %vm590, %v583
  %601 = vst.msk [vmem:[#allocation2 + $0x50] sm:$0xff] %vm590, %v584
  %602 = vst.msk [vmem:[#allocation2 + $0x58] sm:$0xff] %vm590, %v585
  %603 = vst.msk [vmem:[#allocation2 + $0x60] sm:$0xff] %vm590, %v586
  %604 = vst.msk [vmem:[#allocation2 + $0x68] sm:$0xff] %vm590, %v587
  %605 = vst.msk [vmem:[#allocation2 + $0x70] sm:$0xff] %vm590, %v588
  %606 = vst.msk [vmem:[#allocation2 + $0x78] sm:$0xff] %vm590, %v589
  %v607 = vld [vmem:[#allocation3] sm:$0xff]
  %v608 = vld [vmem:[#allocation3 + $0x8] sm:$0xff]
  %v609 = vld [vmem:[#allocation3 + $0x10] sm:$0xff]
  %v610 = vld [vmem:[#allocation3 + $0x18] sm:$0xff]
  %v611 = vld [vmem:[#allocation3 + $0x20] sm:$0xff]
  %v612 = vld [vmem:[#allocation3 + $0x28] sm:$0xff]
  %v613 = vld [vmem:[#allocation3 + $0x30] sm:$0xff]
  %v614 = vld [vmem:[#allocation3 + $0x38] sm:$0xff]
  %v615 = vld [vmem:[#allocation3 + $0x40] sm:$0xff]
  %v616 = vld [vmem:[#allocation3 + $0x48] sm:$0xff]
  %v617 = vld [vmem:[#allocation3 + $0x50] sm:$0xff]
  %v618 = vld [vmem:[#allocation3 + $0x58] sm:$0xff]
  %v619 = vld [vmem:[#allocation3 + $0x60] sm:$0xff]
  %v620 = vld [vmem:[#allocation3 + $0x68] sm:$0xff]
  %v621 = vld [vmem:[#allocation3 + $0x70] sm:$0xff]
  %v622 = vld [vmem:[#allocation3 + $0x78] sm:$0xff]
  %v623 = vsel %vm494, %v286, 1e+30
  %v624 = vsel %vm495, %v287, 1e+30
  %v625 = vsel %vm496, %v288, 1e+30
  %v626 = vsel %vm497, %v289, 1e+30
  %v627 = vsel %vm498, %v290, 1e+30
  %v628 = vsel %vm499, %v291, 1e+30
  %v629 = vsel %vm500, %v292, 1e+30
  %v630 = vsel %vm501, %v293, 1e+30
  %v631 = vsel %vm502, %v294, 1e+30
  %v632 = vsel %vm503, %v295, 1e+30
  %v633 = vsel %vm504, %v296, 1e+30
  %v634 = vsel %vm505, %v297, 1e+30
  %v635 = vsel %vm506, %v298, 1e+30
  %v636 = vsel %vm507, %v299, 1e+30
  %v637 = vsel %vm508, %v300, 1e+30
  %v638 = vsel %vm509, %v301, 1e+30
  %639 = vmin.xlane.f32.xlu0 %v623
  %v640 = vpop.xlane.xlu0 %639
  %641 = vmin.xlane.f32.xlu0 %v624
  %v642 = vpop.xlane.xlu0 %641
  %643 = vmin.xlane.f32.xlu0 %v625
  %v644 = vpop.xlane.xlu0 %643
  %645 = vmin.xlane.f32.xlu0 %v626
  %v646 = vpop.xlane.xlu0 %645
  %647 = vmin.xlane.f32.xlu0 %v627
  %v648 = vpop.xlane.xlu0 %647
  %649 = vmin.xlane.f32.xlu0 %v628
  %v650 = vpop.xlane.xlu0 %649
  %651 = vmin.xlane.f32.xlu0 %v629
  %v652 = vpop.xlane.xlu0 %651
  %653 = vmin.xlane.f32.xlu0 %v630
  %v654 = vpop.xlane.xlu0 %653
  %655 = vmin.xlane.f32.xlu0 %v631
  %v656 = vpop.xlane.xlu0 %655
  %657 = vmin.xlane.f32.xlu0 %v632
  %v658 = vpop.xlane.xlu0 %657
  %659 = vmin.xlane.f32.xlu0 %v633
  %v660 = vpop.xlane.xlu0 %659
  %661 = vmin.xlane.f32.xlu0 %v634
  %v662 = vpop.xlane.xlu0 %661
  %663 = vmin.xlane.f32.xlu0 %v635
  %v664 = vpop.xlane.xlu0 %663
  %665 = vmin.xlane.f32.xlu0 %v636
  %v666 = vpop.xlane.xlu0 %665
  %667 = vmin.xlane.f32.xlu0 %v637
  %v668 = vpop.xlane.xlu0 %667
  %669 = vmin.xlane.f32.xlu0 %v638
  %v670 = vpop.xlane.xlu0 %669
  %v671 = vmin.f32 %v607, %v640
  %v672 = vmin.f32 %v608, %v642
  %v673 = vmin.f32 %v609, %v644
  %v674 = vmin.f32 %v610, %v646
  %v675 = vmin.f32 %v611, %v648
  %v676 = vmin.f32 %v612, %v650
  %v677 = vmin.f32 %v613, %v652
  %v678 = vmin.f32 %v614, %v654
  %v679 = vmin.f32 %v615, %v656
  %v680 = vmin.f32 %v616, %v658
  %v681 = vmin.f32 %v617, %v660
  %v682 = vmin.f32 %v618, %v662
  %v683 = vmin.f32 %v619, %v664
  %v684 = vmin.f32 %v620, %v666
  %v685 = vmin.f32 %v621, %v668
  %v686 = vmin.f32 %v622, %v670
  %687 = vst.msk [vmem:[#allocation3] sm:$0xff] %vm590, %v671
  %688 = vst.msk [vmem:[#allocation3 + $0x8] sm:$0xff] %vm590, %v672
  %689 = vst.msk [vmem:[#allocation3 + $0x10] sm:$0xff] %vm590, %v673
  %690 = vst.msk [vmem:[#allocation3 + $0x18] sm:$0xff] %vm590, %v674
  %691 = vst.msk [vmem:[#allocation3 + $0x20] sm:$0xff] %vm590, %v675
  %692 = vst.msk [vmem:[#allocation3 + $0x28] sm:$0xff] %vm590, %v676
  %693 = vst.msk [vmem:[#allocation3 + $0x30] sm:$0xff] %vm590, %v677
  %694 = vst.msk [vmem:[#allocation3 + $0x38] sm:$0xff] %vm590, %v678
  %695 = vst.msk [vmem:[#allocation3 + $0x40] sm:$0xff] %vm590, %v679
  %696 = vst.msk [vmem:[#allocation3 + $0x48] sm:$0xff] %vm590, %v680
  %697 = vst.msk [vmem:[#allocation3 + $0x50] sm:$0xff] %vm590, %v681
  %698 = vst.msk [vmem:[#allocation3 + $0x58] sm:$0xff] %vm590, %v682
  %699 = vst.msk [vmem:[#allocation3 + $0x60] sm:$0xff] %vm590, %v683
  %700 = vst.msk [vmem:[#allocation3 + $0x68] sm:$0xff] %vm590, %v684
  %701 = vst.msk [vmem:[#allocation3 + $0x70] sm:$0xff] %vm590, %v685
  %702 = vst.msk [vmem:[#allocation3 + $0x78] sm:$0xff] %vm590, %v686
  // Predicated region
  $region38: #{triplet_loss.1} parent=0 // pred_check
    %p703 = pneg %p31
  $region39: #{triplet_loss.1} parent=0 // pred_check_branch
    %705 = sbr.rel (%p703) target = $region41
  $region40: #{triplet_loss.1} parent=0 // pred_region
    %v706 = vld [vmem:[#allocation2] sm:$0xff]
    %v707 = vld [vmem:[#allocation2 + $0x8] sm:$0xff]
    %v708 = vld [vmem:[#allocation2 + $0x10] sm:$0xff]
    %v709 = vld [vmem:[#allocation2 + $0x18] sm:$0xff]
    %v710 = vld [vmem:[#allocation2 + $0x20] sm:$0xff]
    %v711 = vld [vmem:[#allocation2 + $0x28] sm:$0xff]
    %v712 = vld [vmem:[#allocation2 + $0x30] sm:$0xff]
    %v713 = vld [vmem:[#allocation2 + $0x38] sm:$0xff]
    %v714 = vld [vmem:[#allocation2 + $0x40] sm:$0xff]
    %v715 = vld [vmem:[#allocation2 + $0x48] sm:$0xff]
    %v716 = vld [vmem:[#allocation2 + $0x50] sm:$0xff]
    %v717 = vld [vmem:[#allocation2 + $0x58] sm:$0xff]
    %v718 = vld [vmem:[#allocation2 + $0x60] sm:$0xff]
    %v719 = vld [vmem:[#allocation2 + $0x68] sm:$0xff]
    %v720 = vld [vmem:[#allocation2 + $0x70] sm:$0xff]
    %v721 = vld [vmem:[#allocation2 + $0x78] sm:$0xff]
    %v722 = vld [vmem:[#allocation3] sm:$0xff]
    %v723 = vld [vmem:[#allocation3 + $0x8] sm:$0xff]
    %v724 = vld [vmem:[#allocation3 + $0x10] sm:$0xff]
    %v725 = vld [vmem:[#allocation3 + $0x18] sm:$0xff]
    %v726 = vld [vmem:[#allocation3 + $0x20] sm:$0xff]
    %v727 = vld [vmem:[#allocation3 + $0x28] sm:$0xff]
    %v728 = vld [vmem:[#allocation3 + $0x30] sm:$0xff]
    %v729 = vld [vmem:[#allocation3 + $0x38] sm:$0xff]
    %v730 = vld [vmem:[#allocation3 + $0x40] sm:$0xff]
    %v731 = vld [vmem:[#allocation3 + $0x48] sm:$0xff]
    %v732 = vld [vmem:[#allocation3 + $0x50] sm:$0xff]
    %v733 = vld [vmem:[#allocation3 + $0x58] sm:$0xff]
    %v734 = vld [vmem:[#allocation3 + $0x60] sm:$0xff]
    %v735 = vld [vmem:[#allocation3 + $0x68] sm:$0xff]
    %v736 = vld [vmem:[#allocation3 + $0x70] sm:$0xff]
    %v737 = vld [vmem:[#allocation3 + $0x78] sm:$0xff]
    %vm738 = vcmp.gt.f32.partialorder %v706, -5e+29
    %vm739 = vcmp.gt.f32.partialorder %v707, -5e+29
    %vm740 = vcmp.gt.f32.partialorder %v708, -5e+29
    %vm741 = vcmp.gt.f32.partialorder %v709, -5e+29
    %vm742 = vcmp.gt.f32.partialorder %v710, -5e+29
    %vm743 = vcmp.gt.f32.partialorder %v711, -5e+29
    %vm744 = vcmp.gt.f32.partialorder %v712, -5e+29
    %vm745 = vcmp.gt.f32.partialorder %v713, -5e+29
    %vm746 = vcmp.gt.f32.partialorder %v714, -5e+29
    %vm747 = vcmp.gt.f32.partialorder %v715, -5e+29
    %vm748 = vcmp.gt.f32.partialorder %v716, -5e+29
    %vm749 = vcmp.gt.f32.partialorder %v717, -5e+29
    %vm750 = vcmp.gt.f32.partialorder %v718, -5e+29
    %vm751 = vcmp.gt.f32.partialorder %v719, -5e+29
    %vm752 = vcmp.gt.f32.partialorder %v720, -5e+29
    %vm753 = vcmp.gt.f32.partialorder %v721, -5e+29
    %vm754 = vcmp.lt.f32.partialorder %v722, 5e+29
    %vm755 = vcmp.lt.f32.partialorder %v723, 5e+29
    %vm756 = vcmp.lt.f32.partialorder %v724, 5e+29
    %vm757 = vcmp.lt.f32.partialorder %v725, 5e+29
    %vm758 = vcmp.lt.f32.partialorder %v726, 5e+29
    %vm759 = vcmp.lt.f32.partialorder %v727, 5e+29
    %vm760 = vcmp.lt.f32.partialorder %v728, 5e+29
    %vm761 = vcmp.lt.f32.partialorder %v729, 5e+29
    %vm762 = vcmp.lt.f32.partialorder %v730, 5e+29
    %vm763 = vcmp.lt.f32.partialorder %v731, 5e+29
    %vm764 = vcmp.lt.f32.partialorder %v732, 5e+29
    %vm765 = vcmp.lt.f32.partialorder %v733, 5e+29
    %vm766 = vcmp.lt.f32.partialorder %v734, 5e+29
    %vm767 = vcmp.lt.f32.partialorder %v735, 5e+29
    %vm768 = vcmp.lt.f32.partialorder %v736, 5e+29
    %vm769 = vcmp.lt.f32.partialorder %v737, 5e+29
    %vm770 = vmand %vm738, %vm754
    %vm771 = vmand %vm739, %vm755
    %vm772 = vmand %vm740, %vm756
    %vm773 = vmand %vm741, %vm757
    %vm774 = vmand %vm742, %vm758
    %vm775 = vmand %vm743, %vm759
    %vm776 = vmand %vm744, %vm760
    %vm777 = vmand %vm745, %vm761
    %vm778 = vmand %vm746, %vm762
    %vm779 = vmand %vm747, %vm763
    %vm780 = vmand %vm748, %vm764
    %vm781 = vmand %vm749, %vm765
    %vm782 = vmand %vm750, %vm766
    %vm783 = vmand %vm751, %vm767
    %vm784 = vmand %vm752, %vm768
    %vm785 = vmand %vm753, %vm769
    %v786 = vld [vmem:[%s6] sm:$0xff]
    %v787 = vld [vmem:[%s6 + $0x8] sm:$0xff]
    %v788 = vld [vmem:[%s6 + $0x10] sm:$0xff]
    %v789 = vld [vmem:[%s6 + $0x18] sm:$0xff]
    %v790 = vld [vmem:[%s6 + $0x20] sm:$0xff]
    %v791 = vld [vmem:[%s6 + $0x28] sm:$0xff]
    %v792 = vld [vmem:[%s6 + $0x30] sm:$0xff]
    %v793 = vld [vmem:[%s6 + $0x38] sm:$0xff]
    %v794 = vld [vmem:[%s6 + $0x40] sm:$0xff]
    %v795 = vld [vmem:[%s6 + $0x48] sm:$0xff]
    %v796 = vld [vmem:[%s6 + $0x50] sm:$0xff]
    %v797 = vld [vmem:[%s6 + $0x58] sm:$0xff]
    %v798 = vld [vmem:[%s6 + $0x60] sm:$0xff]
    %v799 = vld [vmem:[%s6 + $0x68] sm:$0xff]
    %v800 = vld [vmem:[%s6 + $0x70] sm:$0xff]
    %v801 = vld [vmem:[%s6 + $0x78] sm:$0xff]
    %v802 = vmul.f32 %v706, 2.0
    %v803 = vmul.f32 %v707, 2.0
    %v804 = vmul.f32 %v708, 2.0
    %v805 = vmul.f32 %v709, 2.0
    %v806 = vmul.f32 %v710, 2.0
    %v807 = vmul.f32 %v711, 2.0
    %v808 = vmul.f32 %v712, 2.0
    %v809 = vmul.f32 %v713, 2.0
    %v810 = vmul.f32 %v714, 2.0
    %v811 = vmul.f32 %v715, 2.0
    %v812 = vmul.f32 %v716, 2.0
    %v813 = vmul.f32 %v717, 2.0
    %v814 = vmul.f32 %v718, 2.0
    %v815 = vmul.f32 %v719, 2.0
    %v816 = vmul.f32 %v720, 2.0
    %v817 = vmul.f32 %v721, 2.0
    %v818 = vadd.f32 %v802, %v786
    %v819 = vadd.f32 %v803, %v787
    %v820 = vadd.f32 %v804, %v788
    %v821 = vadd.f32 %v805, %v789
    %v822 = vadd.f32 %v806, %v790
    %v823 = vadd.f32 %v807, %v791
    %v824 = vadd.f32 %v808, %v792
    %v825 = vadd.f32 %v809, %v793
    %v826 = vadd.f32 %v810, %v794
    %v827 = vadd.f32 %v811, %v795
    %v828 = vadd.f32 %v812, %v796
    %v829 = vadd.f32 %v813, %v797
    %v830 = vadd.f32 %v814, %v798
    %v831 = vadd.f32 %v815, %v799
    %v832 = vadd.f32 %v816, %v800
    %v833 = vadd.f32 %v817, %v801
    %v834 = vmax.f32 %v818, 1e-12
    %v835 = vmax.f32 %v819, 1e-12
    %v836 = vmax.f32 %v820, 1e-12
    %v837 = vmax.f32 %v821, 1e-12
    %v838 = vmax.f32 %v822, 1e-12
    %v839 = vmax.f32 %v823, 1e-12
    %v840 = vmax.f32 %v824, 1e-12
    %v841 = vmax.f32 %v825, 1e-12
    %v842 = vmax.f32 %v826, 1e-12
    %v843 = vmax.f32 %v827, 1e-12
    %v844 = vmax.f32 %v828, 1e-12
    %v845 = vmax.f32 %v829, 1e-12
    %v846 = vmax.f32 %v830, 1e-12
    %v847 = vmax.f32 %v831, 1e-12
    %v848 = vmax.f32 %v832, 1e-12
    %v849 = vmax.f32 %v833, 1e-12
    %v850 = vmul.f32 %v722, 2.0
    %v851 = vmul.f32 %v723, 2.0
    %v852 = vmul.f32 %v724, 2.0
    %v853 = vmul.f32 %v725, 2.0
    %v854 = vmul.f32 %v726, 2.0
    %v855 = vmul.f32 %v727, 2.0
    %v856 = vmul.f32 %v728, 2.0
    %v857 = vmul.f32 %v729, 2.0
    %v858 = vmul.f32 %v730, 2.0
    %v859 = vmul.f32 %v731, 2.0
    %v860 = vmul.f32 %v732, 2.0
    %v861 = vmul.f32 %v733, 2.0
    %v862 = vmul.f32 %v734, 2.0
    %v863 = vmul.f32 %v735, 2.0
    %v864 = vmul.f32 %v736, 2.0
    %v865 = vmul.f32 %v737, 2.0
    %v866 = vadd.f32 %v850, %v786
    %v867 = vadd.f32 %v851, %v787
    %v868 = vadd.f32 %v852, %v788
    %v869 = vadd.f32 %v853, %v789
    %v870 = vadd.f32 %v854, %v790
    %v871 = vadd.f32 %v855, %v791
    %v872 = vadd.f32 %v856, %v792
    %v873 = vadd.f32 %v857, %v793
    %v874 = vadd.f32 %v858, %v794
    %v875 = vadd.f32 %v859, %v795
    %v876 = vadd.f32 %v860, %v796
    %v877 = vadd.f32 %v861, %v797
    %v878 = vadd.f32 %v862, %v798
    %v879 = vadd.f32 %v863, %v799
    %v880 = vadd.f32 %v864, %v800
    %v881 = vadd.f32 %v865, %v801
    %v882 = vmax.f32 %v866, 1e-12
    %v883 = vmax.f32 %v867, 1e-12
    %v884 = vmax.f32 %v868, 1e-12
    %v885 = vmax.f32 %v869, 1e-12
    %v886 = vmax.f32 %v870, 1e-12
    %v887 = vmax.f32 %v871, 1e-12
    %v888 = vmax.f32 %v872, 1e-12
    %v889 = vmax.f32 %v873, 1e-12
    %v890 = vmax.f32 %v874, 1e-12
    %v891 = vmax.f32 %v875, 1e-12
    %v892 = vmax.f32 %v876, 1e-12
    %v893 = vmax.f32 %v877, 1e-12
    %v894 = vmax.f32 %v878, 1e-12
    %v895 = vmax.f32 %v879, 1e-12
    %v896 = vmax.f32 %v880, 1e-12
    %v897 = vmax.f32 %v881, 1e-12
    %v898 = vrsqrt.pop %v834
    %v899 = vmul.f32 %v834, %v898
    %vm900 = vcmp.eq.f32.partialorder %v834, inf
    %v901 = vsel %vm900, %v834, %v899
    %vm902 = vcmp.eq.f32.partialorder %v834, 0.0
    %v903 = vand.u32 %v834, 2147483648
    %v904 = vsel %vm902, %v903, %v901
    %v905 = vrsqrt.pop %v835
    %v906 = vmul.f32 %v835, %v905
    %vm907 = vcmp.eq.f32.partialorder %v835, inf
    %v908 = vsel %vm907, %v835, %v906
    %vm909 = vcmp.eq.f32.partialorder %v835, 0.0
    %v910 = vand.u32 %v835, 2147483648
    %v911 = vsel %vm909, %v910, %v908
    %v912 = vrsqrt.pop %v836
    %v913 = vmul.f32 %v836, %v912
    %vm914 = vcmp.eq.f32.partialorder %v836, inf
    %v915 = vsel %vm914, %v836, %v913
    %vm916 = vcmp.eq.f32.partialorder %v836, 0.0
    %v917 = vand.u32 %v836, 2147483648
    %v918 = vsel %vm916, %v917, %v915
    %v919 = vrsqrt.pop %v837
    %v920 = vmul.f32 %v837, %v919
    %vm921 = vcmp.eq.f32.partialorder %v837, inf
    %v922 = vsel %vm921, %v837, %v920
    %vm923 = vcmp.eq.f32.partialorder %v837, 0.0
    %v924 = vand.u32 %v837, 2147483648
    %v925 = vsel %vm923, %v924, %v922
    %v926 = vrsqrt.pop %v838
    %v927 = vmul.f32 %v838, %v926
    %vm928 = vcmp.eq.f32.partialorder %v838, inf
    %v929 = vsel %vm928, %v838, %v927
    %vm930 = vcmp.eq.f32.partialorder %v838, 0.0
    %v931 = vand.u32 %v838, 2147483648
    %v932 = vsel %vm930, %v931, %v929
    %v933 = vrsqrt.pop %v839
    %v934 = vmul.f32 %v839, %v933
    %vm935 = vcmp.eq.f32.partialorder %v839, inf
    %v936 = vsel %vm935, %v839, %v934
    %vm937 = vcmp.eq.f32.partialorder %v839, 0.0
    %v938 = vand.u32 %v839, 2147483648
    %v939 = vsel %vm937, %v938, %v936
    %v940 = vrsqrt.pop %v840
    %v941 = vmul.f32 %v840, %v940
    %vm942 = vcmp.eq.f32.partialorder %v840, inf
    %v943 = vsel %vm942, %v840, %v941
    %vm944 = vcmp.eq.f32.partialorder %v840, 0.0
    %v945 = vand.u32 %v840, 2147483648
    %v946 = vsel %vm944, %v945, %v943
    %v947 = vrsqrt.pop %v841
    %v948 = vmul.f32 %v841, %v947
    %vm949 = vcmp.eq.f32.partialorder %v841, inf
    %v950 = vsel %vm949, %v841, %v948
    %vm951 = vcmp.eq.f32.partialorder %v841, 0.0
    %v952 = vand.u32 %v841, 2147483648
    %v953 = vsel %vm951, %v952, %v950
    %v954 = vrsqrt.pop %v842
    %v955 = vmul.f32 %v842, %v954
    %vm956 = vcmp.eq.f32.partialorder %v842, inf
    %v957 = vsel %vm956, %v842, %v955
    %vm958 = vcmp.eq.f32.partialorder %v842, 0.0
    %v959 = vand.u32 %v842, 2147483648
    %v960 = vsel %vm958, %v959, %v957
    %v961 = vrsqrt.pop %v843
    %v962 = vmul.f32 %v843, %v961
    %vm963 = vcmp.eq.f32.partialorder %v843, inf
    %v964 = vsel %vm963, %v843, %v962
    %vm965 = vcmp.eq.f32.partialorder %v843, 0.0
    %v966 = vand.u32 %v843, 2147483648
    %v967 = vsel %vm965, %v966, %v964
    %v968 = vrsqrt.pop %v844
    %v969 = vmul.f32 %v844, %v968
    %vm970 = vcmp.eq.f32.partialorder %v844, inf
    %v971 = vsel %vm970, %v844, %v969
    %vm972 = vcmp.eq.f32.partialorder %v844, 0.0
    %v973 = vand.u32 %v844, 2147483648
    %v974 = vsel %vm972, %v973, %v971
    %v975 = vrsqrt.pop %v845
    %v976 = vmul.f32 %v845, %v975
    %vm977 = vcmp.eq.f32.partialorder %v845, inf
    %v978 = vsel %vm977, %v845, %v976
    %vm979 = vcmp.eq.f32.partialorder %v845, 0.0
    %v980 = vand.u32 %v845, 2147483648
    %v981 = vsel %vm979, %v980, %v978
    %v982 = vrsqrt.pop %v846
    %v983 = vmul.f32 %v846, %v982
    %vm984 = vcmp.eq.f32.partialorder %v846, inf
    %v985 = vsel %vm984, %v846, %v983
    %vm986 = vcmp.eq.f32.partialorder %v846, 0.0
    %v987 = vand.u32 %v846, 2147483648
    %v988 = vsel %vm986, %v987, %v985
    %v989 = vrsqrt.pop %v847
    %v990 = vmul.f32 %v847, %v989
    %vm991 = vcmp.eq.f32.partialorder %v847, inf
    %v992 = vsel %vm991, %v847, %v990
    %vm993 = vcmp.eq.f32.partialorder %v847, 0.0
    %v994 = vand.u32 %v847, 2147483648
    %v995 = vsel %vm993, %v994, %v992
    %v996 = vrsqrt.pop %v848
    %v997 = vmul.f32 %v848, %v996
    %vm998 = vcmp.eq.f32.partialorder %v848, inf
    %v999 = vsel %vm998, %v848, %v997
    %vm1000 = vcmp.eq.f32.partialorder %v848, 0.0
    %v1001 = vand.u32 %v848, 2147483648
    %v1002 = vsel %vm1000, %v1001, %v999
    %v1003 = vrsqrt.pop %v849
    %v1004 = vmul.f32 %v849, %v1003
    %vm1005 = vcmp.eq.f32.partialorder %v849, inf
    %v1006 = vsel %vm1005, %v849, %v1004
    %vm1007 = vcmp.eq.f32.partialorder %v849, 0.0
    %v1008 = vand.u32 %v849, 2147483648
    %v1009 = vsel %vm1007, %v1008, %v1006
    %v1010 = vrsqrt.pop %v882
    %v1011 = vmul.f32 %v882, %v1010
    %vm1012 = vcmp.eq.f32.partialorder %v882, inf
    %v1013 = vsel %vm1012, %v882, %v1011
    %vm1014 = vcmp.eq.f32.partialorder %v882, 0.0
    %v1015 = vand.u32 %v882, 2147483648
    %v1016 = vsel %vm1014, %v1015, %v1013
    %v1017 = vrsqrt.pop %v883
    %v1018 = vmul.f32 %v883, %v1017
    %vm1019 = vcmp.eq.f32.partialorder %v883, inf
    %v1020 = vsel %vm1019, %v883, %v1018
    %vm1021 = vcmp.eq.f32.partialorder %v883, 0.0
    %v1022 = vand.u32 %v883, 2147483648
    %v1023 = vsel %vm1021, %v1022, %v1020
    %v1024 = vrsqrt.pop %v884
    %v1025 = vmul.f32 %v884, %v1024
    %vm1026 = vcmp.eq.f32.partialorder %v884, inf
    %v1027 = vsel %vm1026, %v884, %v1025
    %vm1028 = vcmp.eq.f32.partialorder %v884, 0.0
    %v1029 = vand.u32 %v884, 2147483648
    %v1030 = vsel %vm1028, %v1029, %v1027
    %v1031 = vrsqrt.pop %v885
    %v1032 = vmul.f32 %v885, %v1031
    %vm1033 = vcmp.eq.f32.partialorder %v885, inf
    %v1034 = vsel %vm1033, %v885, %v1032
    %vm1035 = vcmp.eq.f32.partialorder %v885, 0.0
    %v1036 = vand.u32 %v885, 2147483648
    %v1037 = vsel %vm1035, %v1036, %v1034
    %v1038 = vrsqrt.pop %v886
    %v1039 = vmul.f32 %v886, %v1038
    %vm1040 = vcmp.eq.f32.partialorder %v886, inf
    %v1041 = vsel %vm1040, %v886, %v1039
    %vm1042 = vcmp.eq.f32.partialorder %v886, 0.0
    %v1043 = vand.u32 %v886, 2147483648
    %v1044 = vsel %vm1042, %v1043, %v1041
    %v1045 = vrsqrt.pop %v887
    %v1046 = vmul.f32 %v887, %v1045
    %vm1047 = vcmp.eq.f32.partialorder %v887, inf
    %v1048 = vsel %vm1047, %v887, %v1046
    %vm1049 = vcmp.eq.f32.partialorder %v887, 0.0
    %v1050 = vand.u32 %v887, 2147483648
    %v1051 = vsel %vm1049, %v1050, %v1048
    %v1052 = vrsqrt.pop %v888
    %v1053 = vmul.f32 %v888, %v1052
    %vm1054 = vcmp.eq.f32.partialorder %v888, inf
    %v1055 = vsel %vm1054, %v888, %v1053
    %vm1056 = vcmp.eq.f32.partialorder %v888, 0.0
    %v1057 = vand.u32 %v888, 2147483648
    %v1058 = vsel %vm1056, %v1057, %v1055
    %v1059 = vrsqrt.pop %v889
    %v1060 = vmul.f32 %v889, %v1059
    %vm1061 = vcmp.eq.f32.partialorder %v889, inf
    %v1062 = vsel %vm1061, %v889, %v1060
    %vm1063 = vcmp.eq.f32.partialorder %v889, 0.0
    %v1064 = vand.u32 %v889, 2147483648
    %v1065 = vsel %vm1063, %v1064, %v1062
    %v1066 = vrsqrt.pop %v890
    %v1067 = vmul.f32 %v890, %v1066
    %vm1068 = vcmp.eq.f32.partialorder %v890, inf
    %v1069 = vsel %vm1068, %v890, %v1067
    %vm1070 = vcmp.eq.f32.partialorder %v890, 0.0
    %v1071 = vand.u32 %v890, 2147483648
    %v1072 = vsel %vm1070, %v1071, %v1069
    %v1073 = vrsqrt.pop %v891
    %v1074 = vmul.f32 %v891, %v1073
    %vm1075 = vcmp.eq.f32.partialorder %v891, inf
    %v1076 = vsel %vm1075, %v891, %v1074
    %vm1077 = vcmp.eq.f32.partialorder %v891, 0.0
    %v1078 = vand.u32 %v891, 2147483648
    %v1079 = vsel %vm1077, %v1078, %v1076
    %v1080 = vrsqrt.pop %v892
    %v1081 = vmul.f32 %v892, %v1080
    %vm1082 = vcmp.eq.f32.partialorder %v892, inf
    %v1083 = vsel %vm1082, %v892, %v1081
    %vm1084 = vcmp.eq.f32.partialorder %v892, 0.0
    %v1085 = vand.u32 %v892, 2147483648
    %v1086 = vsel %vm1084, %v1085, %v1083
    %v1087 = vrsqrt.pop %v893
    %v1088 = vmul.f32 %v893, %v1087
    %vm1089 = vcmp.eq.f32.partialorder %v893, inf
    %v1090 = vsel %vm1089, %v893, %v1088
    %vm1091 = vcmp.eq.f32.partialorder %v893, 0.0
    %v1092 = vand.u32 %v893, 2147483648
    %v1093 = vsel %vm1091, %v1092, %v1090
    %v1094 = vrsqrt.pop %v894
    %v1095 = vmul.f32 %v894, %v1094
    %vm1096 = vcmp.eq.f32.partialorder %v894, inf
    %v1097 = vsel %vm1096, %v894, %v1095
    %vm1098 = vcmp.eq.f32.partialorder %v894, 0.0
    %v1099 = vand.u32 %v894, 2147483648
    %v1100 = vsel %vm1098, %v1099, %v1097
    %v1101 = vrsqrt.pop %v895
    %v1102 = vmul.f32 %v895, %v1101
    %vm1103 = vcmp.eq.f32.partialorder %v895, inf
    %v1104 = vsel %vm1103, %v895, %v1102
    %vm1105 = vcmp.eq.f32.partialorder %v895, 0.0
    %v1106 = vand.u32 %v895, 2147483648
    %v1107 = vsel %vm1105, %v1106, %v1104
    %v1108 = vrsqrt.pop %v896
    %v1109 = vmul.f32 %v896, %v1108
    %vm1110 = vcmp.eq.f32.partialorder %v896, inf
    %v1111 = vsel %vm1110, %v896, %v1109
    %vm1112 = vcmp.eq.f32.partialorder %v896, 0.0
    %v1113 = vand.u32 %v896, 2147483648
    %v1114 = vsel %vm1112, %v1113, %v1111
    %v1115 = vrsqrt.pop %v897
    %v1116 = vmul.f32 %v897, %v1115
    %vm1117 = vcmp.eq.f32.partialorder %v897, inf
    %v1118 = vsel %vm1117, %v897, %v1116
    %vm1119 = vcmp.eq.f32.partialorder %v897, 0.0
    %v1120 = vand.u32 %v897, 2147483648
    %v1121 = vsel %vm1119, %v1120, %v1118
    %v1122 = vsub.f32 %v904, %v1016
    %v1123 = vsub.f32 %v911, %v1023
    %v1124 = vsub.f32 %v918, %v1030
    %v1125 = vsub.f32 %v925, %v1037
    %v1126 = vsub.f32 %v932, %v1044
    %v1127 = vsub.f32 %v939, %v1051
    %v1128 = vsub.f32 %v946, %v1058
    %v1129 = vsub.f32 %v953, %v1065
    %v1130 = vsub.f32 %v960, %v1072
    %v1131 = vsub.f32 %v967, %v1079
    %v1132 = vsub.f32 %v974, %v1086
    %v1133 = vsub.f32 %v981, %v1093
    %v1134 = vsub.f32 %v988, %v1100
    %v1135 = vsub.f32 %v995, %v1107
    %v1136 = vsub.f32 %v1002, %v1114
    %v1137 = vsub.f32 %v1009, %v1121
    %v1138 = vmax.f32 %v1122, 0.0
    %v1139 = vmax.f32 %v1123, 0.0
    %v1140 = vmax.f32 %v1124, 0.0
    %v1141 = vmax.f32 %v1125, 0.0
    %v1142 = vmax.f32 %v1126, 0.0
    %v1143 = vmax.f32 %v1127, 0.0
    %v1144 = vmax.f32 %v1128, 0.0
    %v1145 = vmax.f32 %v1129, 0.0
    %v1146 = vmax.f32 %v1130, 0.0
    %v1147 = vmax.f32 %v1131, 0.0
    %v1148 = vmax.f32 %v1132, 0.0
    %v1149 = vmax.f32 %v1133, 0.0
    %v1150 = vmax.f32 %v1134, 0.0
    %v1151 = vmax.f32 %v1135, 0.0
    %v1152 = vmax.f32 %v1136, 0.0
    %v1153 = vmax.f32 %v1137, 0.0
    %v1154 = vand.u32 2147483647, %v1122
    %v1155 = vand.u32 2147483647, %v1123
    %v1156 = vand.u32 2147483647, %v1124
    %v1157 = vand.u32 2147483647, %v1125
    %v1158 = vand.u32 2147483647, %v1126
    %v1159 = vand.u32 2147483647, %v1127
    %v1160 = vand.u32 2147483647, %v1128
    %v1161 = vand.u32 2147483647, %v1129
    %v1162 = vand.u32 2147483647, %v1130
    %v1163 = vand.u32 2147483647, %v1131
    %v1164 = vand.u32 2147483647, %v1132
    %v1165 = vand.u32 2147483647, %v1133
    %v1166 = vand.u32 2147483647, %v1134
    %v1167 = vand.u32 2147483647, %v1135
    %v1168 = vand.u32 2147483647, %v1136
    %v1169 = vand.u32 2147483647, %v1137
    %v1170 = vsub.f32 0.0, %v1154
    %v1171 = vsub.f32 0.0, %v1155
    %v1172 = vsub.f32 0.0, %v1156
    %v1173 = vsub.f32 0.0, %v1157
    %v1174 = vsub.f32 0.0, %v1158
    %v1175 = vsub.f32 0.0, %v1159
    %v1176 = vsub.f32 0.0, %v1160
    %v1177 = vsub.f32 0.0, %v1161
    %v1178 = vsub.f32 0.0, %v1162
    %v1179 = vsub.f32 0.0, %v1163
    %v1180 = vsub.f32 0.0, %v1164
    %v1181 = vsub.f32 0.0, %v1165
    %v1182 = vsub.f32 0.0, %v1166
    %v1183 = vsub.f32 0.0, %v1167
    %v1184 = vsub.f32 0.0, %v1168
    %v1185 = vsub.f32 0.0, %v1169
    %v1186 = vmul.f32 %v1170, 1.442695
    %v1187 = vpow.pop %v1186
    %v1188 = vmul.f32 %v1171, 1.442695
    %v1189 = vpow.pop %v1188
    %v1190 = vmul.f32 %v1172, 1.442695
    %v1191 = vpow.pop %v1190
    %v1192 = vmul.f32 %v1173, 1.442695
    %v1193 = vpow.pop %v1192
    %v1194 = vmul.f32 %v1174, 1.442695
    %v1195 = vpow.pop %v1194
    %v1196 = vmul.f32 %v1175, 1.442695
    %v1197 = vpow.pop %v1196
    %v1198 = vmul.f32 %v1176, 1.442695
    %v1199 = vpow.pop %v1198
    %v1200 = vmul.f32 %v1177, 1.442695
    %v1201 = vpow.pop %v1200
    %v1202 = vmul.f32 %v1178, 1.442695
    %v1203 = vpow.pop %v1202
    %v1204 = vmul.f32 %v1179, 1.442695
    %v1205 = vpow.pop %v1204
    %v1206 = vmul.f32 %v1180, 1.442695
    %v1207 = vpow.pop %v1206
    %v1208 = vmul.f32 %v1181, 1.442695
    %v1209 = vpow.pop %v1208
    %v1210 = vmul.f32 %v1182, 1.442695
    %v1211 = vpow.pop %v1210
    %v1212 = vmul.f32 %v1183, 1.442695
    %v1213 = vpow.pop %v1212
    %v1214 = vmul.f32 %v1184, 1.442695
    %v1215 = vpow.pop %v1214
    %v1216 = vmul.f32 %v1185, 1.442695
    %v1217 = vpow.pop %v1216
    %v1218 = vadd.f32 %v1187, 1.0
    %v1219 = vlog2.pop %v1218
    %v1220 = vmul.f32 %v1219, 0.6931472
    %v1221 = vmul.f32 -0.5, %v1187
    %v1222 = vadd.f32 %v1221, 1.0
    %v1223 = vmul.f32 %v1222, %v1187
    %v1224 = vand.u32 2147483647, %v1187
    %vm1225 = vcmp.lt.f32.partialorder %v1224, 0.0004427343
    %v1226 = vsel %vm1225, %v1223, %v1220
    %v1227 = vadd.f32 %v1189, 1.0
    %v1228 = vlog2.pop %v1227
    %v1229 = vmul.f32 %v1228, 0.6931472
    %v1230 = vmul.f32 -0.5, %v1189
    %v1231 = vadd.f32 %v1230, 1.0
    %v1232 = vmul.f32 %v1231, %v1189
    %v1233 = vand.u32 2147483647, %v1189
    %vm1234 = vcmp.lt.f32.partialorder %v1233, 0.0004427343
    %v1235 = vsel %vm1234, %v1232, %v1229
    %v1236 = vadd.f32 %v1191, 1.0
    %v1237 = vlog2.pop %v1236
    %v1238 = vmul.f32 %v1237, 0.6931472
    %v1239 = vmul.f32 -0.5, %v1191
    %v1240 = vadd.f32 %v1239, 1.0
    %v1241 = vmul.f32 %v1240, %v1191
    %v1242 = vand.u32 2147483647, %v1191
    %vm1243 = vcmp.lt.f32.partialorder %v1242, 0.0004427343
    %v1244 = vsel %vm1243, %v1241, %v1238
    %v1245 = vadd.f32 %v1193, 1.0
    %v1246 = vlog2.pop %v1245
    %v1247 = vmul.f32 %v1246, 0.6931472
    %v1248 = vmul.f32 -0.5, %v1193
    %v1249 = vadd.f32 %v1248, 1.0
    %v1250 = vmul.f32 %v1249, %v1193
    %v1251 = vand.u32 2147483647, %v1193
    %vm1252 = vcmp.lt.f32.partialorder %v1251, 0.0004427343
    %v1253 = vsel %vm1252, %v1250, %v1247
    %v1254 = vadd.f32 %v1195, 1.0
    %v1255 = vlog2.pop %v1254
    %v1256 = vmul.f32 %v1255, 0.6931472
    %v1257 = vmul.f32 -0.5, %v1195
    %v1258 = vadd.f32 %v1257, 1.0
    %v1259 = vmul.f32 %v1258, %v1195
    %v1260 = vand.u32 2147483647, %v1195
    %vm1261 = vcmp.lt.f32.partialorder %v1260, 0.0004427343
    %v1262 = vsel %vm1261, %v1259, %v1256
    %v1263 = vadd.f32 %v1197, 1.0
    %v1264 = vlog2.pop %v1263
    %v1265 = vmul.f32 %v1264, 0.6931472
    %v1266 = vmul.f32 -0.5, %v1197
    %v1267 = vadd.f32 %v1266, 1.0
    %v1268 = vmul.f32 %v1267, %v1197
    %v1269 = vand.u32 2147483647, %v1197
    %vm1270 = vcmp.lt.f32.partialorder %v1269, 0.0004427343
    %v1271 = vsel %vm1270, %v1268, %v1265
    %v1272 = vadd.f32 %v1199, 1.0
    %v1273 = vlog2.pop %v1272
    %v1274 = vmul.f32 %v1273, 0.6931472
    %v1275 = vmul.f32 -0.5, %v1199
    %v1276 = vadd.f32 %v1275, 1.0
    %v1277 = vmul.f32 %v1276, %v1199
    %v1278 = vand.u32 2147483647, %v1199
    %vm1279 = vcmp.lt.f32.partialorder %v1278, 0.0004427343
    %v1280 = vsel %vm1279, %v1277, %v1274
    %v1281 = vadd.f32 %v1201, 1.0
    %v1282 = vlog2.pop %v1281
    %v1283 = vmul.f32 %v1282, 0.6931472
    %v1284 = vmul.f32 -0.5, %v1201
    %v1285 = vadd.f32 %v1284, 1.0
    %v1286 = vmul.f32 %v1285, %v1201
    %v1287 = vand.u32 2147483647, %v1201
    %vm1288 = vcmp.lt.f32.partialorder %v1287, 0.0004427343
    %v1289 = vsel %vm1288, %v1286, %v1283
    %v1290 = vadd.f32 %v1203, 1.0
    %v1291 = vlog2.pop %v1290
    %v1292 = vmul.f32 %v1291, 0.6931472
    %v1293 = vmul.f32 -0.5, %v1203
    %v1294 = vadd.f32 %v1293, 1.0
    %v1295 = vmul.f32 %v1294, %v1203
    %v1296 = vand.u32 2147483647, %v1203
    %vm1297 = vcmp.lt.f32.partialorder %v1296, 0.0004427343
    %v1298 = vsel %vm1297, %v1295, %v1292
    %v1299 = vadd.f32 %v1205, 1.0
    %v1300 = vlog2.pop %v1299
    %v1301 = vmul.f32 %v1300, 0.6931472
    %v1302 = vmul.f32 -0.5, %v1205
    %v1303 = vadd.f32 %v1302, 1.0
    %v1304 = vmul.f32 %v1303, %v1205
    %v1305 = vand.u32 2147483647, %v1205
    %vm1306 = vcmp.lt.f32.partialorder %v1305, 0.0004427343
    %v1307 = vsel %vm1306, %v1304, %v1301
    %v1308 = vadd.f32 %v1207, 1.0
    %v1309 = vlog2.pop %v1308
    %v1310 = vmul.f32 %v1309, 0.6931472
    %v1311 = vmul.f32 -0.5, %v1207
    %v1312 = vadd.f32 %v1311, 1.0
    %v1313 = vmul.f32 %v1312, %v1207
    %v1314 = vand.u32 2147483647, %v1207
    %vm1315 = vcmp.lt.f32.partialorder %v1314, 0.0004427343
    %v1316 = vsel %vm1315, %v1313, %v1310
    %v1317 = vadd.f32 %v1209, 1.0
    %v1318 = vlog2.pop %v1317
    %v1319 = vmul.f32 %v1318, 0.6931472
    %v1320 = vmul.f32 -0.5, %v1209
    %v1321 = vadd.f32 %v1320, 1.0
    %v1322 = vmul.f32 %v1321, %v1209
    %v1323 = vand.u32 2147483647, %v1209
    %vm1324 = vcmp.lt.f32.partialorder %v1323, 0.0004427343
    %v1325 = vsel %vm1324, %v1322, %v1319
    %v1326 = vadd.f32 %v1211, 1.0
    %v1327 = vlog2.pop %v1326
    %v1328 = vmul.f32 %v1327, 0.6931472
    %v1329 = vmul.f32 -0.5, %v1211
    %v1330 = vadd.f32 %v1329, 1.0
    %v1331 = vmul.f32 %v1330, %v1211
    %v1332 = vand.u32 2147483647, %v1211
    %vm1333 = vcmp.lt.f32.partialorder %v1332, 0.0004427343
    %v1334 = vsel %vm1333, %v1331, %v1328
    %v1335 = vadd.f32 %v1213, 1.0
    %v1336 = vlog2.pop %v1335
    %v1337 = vmul.f32 %v1336, 0.6931472
    %v1338 = vmul.f32 -0.5, %v1213
    %v1339 = vadd.f32 %v1338, 1.0
    %v1340 = vmul.f32 %v1339, %v1213
    %v1341 = vand.u32 2147483647, %v1213
    %vm1342 = vcmp.lt.f32.partialorder %v1341, 0.0004427343
    %v1343 = vsel %vm1342, %v1340, %v1337
    %v1344 = vadd.f32 %v1215, 1.0
    %v1345 = vlog2.pop %v1344
    %v1346 = vmul.f32 %v1345, 0.6931472
    %v1347 = vmul.f32 -0.5, %v1215
    %v1348 = vadd.f32 %v1347, 1.0
    %v1349 = vmul.f32 %v1348, %v1215
    %v1350 = vand.u32 2147483647, %v1215
    %vm1351 = vcmp.lt.f32.partialorder %v1350, 0.0004427343
    %v1352 = vsel %vm1351, %v1349, %v1346
    %v1353 = vadd.f32 %v1217, 1.0
    %v1354 = vlog2.pop %v1353
    %v1355 = vmul.f32 %v1354, 0.6931472
    %v1356 = vmul.f32 -0.5, %v1217
    %v1357 = vadd.f32 %v1356, 1.0
    %v1358 = vmul.f32 %v1357, %v1217
    %v1359 = vand.u32 2147483647, %v1217
    %vm1360 = vcmp.lt.f32.partialorder %v1359, 0.0004427343
    %v1361 = vsel %vm1360, %v1358, %v1355
    %v1362 = vadd.f32 %v1138, %v1226
    %v1363 = vadd.f32 %v1139, %v1235
    %v1364 = vadd.f32 %v1140, %v1244
    %v1365 = vadd.f32 %v1141, %v1253
    %v1366 = vadd.f32 %v1142, %v1262
    %v1367 = vadd.f32 %v1143, %v1271
    %v1368 = vadd.f32 %v1144, %v1280
    %v1369 = vadd.f32 %v1145, %v1289
    %v1370 = vadd.f32 %v1146, %v1298
    %v1371 = vadd.f32 %v1147, %v1307
    %v1372 = vadd.f32 %v1148, %v1316
    %v1373 = vadd.f32 %v1149, %v1325
    %v1374 = vadd.f32 %v1150, %v1334
    %v1375 = vadd.f32 %v1151, %v1343
    %v1376 = vadd.f32 %v1152, %v1352
    %v1377 = vadd.f32 %v1153, %v1361
    %v1378 = vsel %vm770, %v1362, 0.0
    %v1379 = vsel %vm771, %v1363, 0.0
    %v1380 = vsel %vm772, %v1364, 0.0
    %v1381 = vsel %vm773, %v1365, 0.0
    %v1382 = vsel %vm774, %v1366, 0.0
    %v1383 = vsel %vm775, %v1367, 0.0
    %v1384 = vsel %vm776, %v1368, 0.0
    %v1385 = vsel %vm777, %v1369, 0.0
    %v1386 = vsel %vm778, %v1370, 0.0
    %v1387 = vsel %vm779, %v1371, 0.0
    %v1388 = vsel %vm780, %v1372, 0.0
    %v1389 = vsel %vm781, %v1373, 0.0
    %v1390 = vsel %vm782, %v1374, 0.0
    %v1391 = vsel %vm783, %v1375, 0.0
    %v1392 = vsel %vm784, %v1376, 0.0
    %v1393 = vsel %vm785, %v1377, 0.0
    %1394 = vst.msk [vmem:[%s8] sm:$0xff] %vm590, %v1378
    %1395 = vst.msk [vmem:[%s8 + $0x8] sm:$0xff] %vm590, %v1379
    %1396 = vst.msk [vmem:[%s8 + $0x10] sm:$0xff] %vm590, %v1380
    %1397 = vst.msk [vmem:[%s8 + $0x18] sm:$0xff] %vm590, %v1381
    %1398 = vst.msk [vmem:[%s8 + $0x20] sm:$0xff] %vm590, %v1382
    %1399 = vst.msk [vmem:[%s8 + $0x28] sm:$0xff] %vm590, %v1383
    %1400 = vst.msk [vmem:[%s8 + $0x30] sm:$0xff] %vm590, %v1384
    %1401 = vst.msk [vmem:[%s8 + $0x38] sm:$0xff] %vm590, %v1385
    %1402 = vst.msk [vmem:[%s8 + $0x40] sm:$0xff] %vm590, %v1386
    %1403 = vst.msk [vmem:[%s8 + $0x48] sm:$0xff] %vm590, %v1387
    %1404 = vst.msk [vmem:[%s8 + $0x50] sm:$0xff] %vm590, %v1388
    %1405 = vst.msk [vmem:[%s8 + $0x58] sm:$0xff] %vm590, %v1389
    %1406 = vst.msk [vmem:[%s8 + $0x60] sm:$0xff] %vm590, %v1390
    %1407 = vst.msk [vmem:[%s8 + $0x68] sm:$0xff] %vm590, %v1391
    %1408 = vst.msk [vmem:[%s8 + $0x70] sm:$0xff] %vm590, %v1392
    %1409 = vst.msk [vmem:[%s8 + $0x78] sm:$0xff] %vm590, %v1393
    %v1410 = vsel %vm770, 1, 0
    %v1411 = vsel %vm771, 1, 0
    %v1412 = vsel %vm772, 1, 0
    %v1413 = vsel %vm773, 1, 0
    %v1414 = vsel %vm774, 1, 0
    %v1415 = vsel %vm775, 1, 0
    %v1416 = vsel %vm776, 1, 0
    %v1417 = vsel %vm777, 1, 0
    %v1418 = vsel %vm778, 1, 0
    %v1419 = vsel %vm779, 1, 0
    %v1420 = vsel %vm780, 1, 0
    %v1421 = vsel %vm781, 1, 0
    %v1422 = vsel %vm782, 1, 0
    %v1423 = vsel %vm783, 1, 0
    %v1424 = vsel %vm784, 1, 0
    %v1425 = vsel %vm785, 1, 0
    %v1426 = vcvt.s32.f32 %v1410
    %v1427 = vcvt.s32.f32 %v1411
    %v1428 = vcvt.s32.f32 %v1412
    %v1429 = vcvt.s32.f32 %v1413
    %v1430 = vcvt.s32.f32 %v1414
    %v1431 = vcvt.s32.f32 %v1415
    %v1432 = vcvt.s32.f32 %v1416
    %v1433 = vcvt.s32.f32 %v1417
    %v1434 = vcvt.s32.f32 %v1418
    %v1435 = vcvt.s32.f32 %v1419
    %v1436 = vcvt.s32.f32 %v1420
    %v1437 = vcvt.s32.f32 %v1421
    %v1438 = vcvt.s32.f32 %v1422
    %v1439 = vcvt.s32.f32 %v1423
    %v1440 = vcvt.s32.f32 %v1424
    %v1441 = vcvt.s32.f32 %v1425
    %1442 = vst.msk [vmem:[%s9] sm:$0xff] %vm590, %v1426
    %1443 = vst.msk [vmem:[%s9 + $0x8] sm:$0xff] %vm590, %v1427
    %1444 = vst.msk [vmem:[%s9 + $0x10] sm:$0xff] %vm590, %v1428
    %1445 = vst.msk [vmem:[%s9 + $0x18] sm:$0xff] %vm590, %v1429
    %1446 = vst.msk [vmem:[%s9 + $0x20] sm:$0xff] %vm590, %v1430
    %1447 = vst.msk [vmem:[%s9 + $0x28] sm:$0xff] %vm590, %v1431
    %1448 = vst.msk [vmem:[%s9 + $0x30] sm:$0xff] %vm590, %v1432
    %1449 = vst.msk [vmem:[%s9 + $0x38] sm:$0xff] %vm590, %v1433
    %1450 = vst.msk [vmem:[%s9 + $0x40] sm:$0xff] %vm590, %v1434
    %1451 = vst.msk [vmem:[%s9 + $0x48] sm:$0xff] %vm590, %v1435
    %1452 = vst.msk [vmem:[%s9 + $0x50] sm:$0xff] %vm590, %v1436
    %1453 = vst.msk [vmem:[%s9 + $0x58] sm:$0xff] %vm590, %v1437
    %1454 = vst.msk [vmem:[%s9 + $0x60] sm:$0xff] %vm590, %v1438
    %1455 = vst.msk [vmem:[%s9 + $0x68] sm:$0xff] %vm590, %v1439
    %1456 = vst.msk [vmem:[%s9 + $0x70] sm:$0xff] %vm590, %v1440
    %1457 = vst.msk [vmem:[%s9 + $0x78] sm:$0xff] %vm590, %v1441
  $region41: #{triplet_loss.1} parent=0 // pred_fallthru
    _
  // Predicated region
  $region42: #{triplet_loss.1} parent=0 // pred_check
    _
  $region43: #{triplet_loss.1} parent=0 // pred_check_branch
    %1459 = sbr.rel (0) target = $region45
  $region44: #{triplet_loss.1} parent=0 // pred_region
    _
  $region45: #{triplet_loss.1} parent=0 // pred_fallthru
    _
  // Predicated region
  $region46: #{triplet_loss.1} parent=0 // pred_check
    _
  $region47: #{triplet_loss.1} parent=0 // pred_check_branch
    %1461 = sbr.rel (0) target = $region49
  $region48: #{triplet_loss.1} parent=0 // pred_region
    _
  $region49: #{triplet_loss.1} parent=0 // pred_fallthru
    _
  // Predicated region
  $region50: #{triplet_loss.1} parent=0 // pred_check
    _
  $region51: #{triplet_loss.1} parent=0 // pred_check_branch
    %1463 = sbr.rel (0) target = $region53
  $region52: #{triplet_loss.1} parent=0 // pred_region
    _
  $region53: #{triplet_loss.1} parent=0 // pred_fallthru
    _
  // Predicated region
  $region54: #{triplet_loss.1} parent=0 // pred_check
    _
  $region55: #{triplet_loss.1} parent=0 // pred_check_branch
    %1465 = sbr.rel (0) target = $region57
  $region56: #{triplet_loss.1} parent=0 // pred_region
    _
  $region57: #{triplet_loss.1} parent=0 // pred_fallthru
    _

</llo_original>
